<compile_context>
chip_gen: v7x
topology: tpu7x:2x2x1
jax: 0.10.0
libtpu: 0.0.40
codegen_flags: <defaults>
</compile_context>

<pallas_src>
import functools

import jax
import jax.numpy as jnp
from jax.experimental import pallas as pl
from jax.experimental.pallas import tpu as pltpu

LN_EPS = 1e-12
CLS_PAD = 128  # lane-dense padded width for the 1-unit classifier output


def _pick_tile_m(M, cap=512):
    """Largest M-tile <= cap that divides M (M itself if already small)."""
    if M <= cap:
        return M
    t = cap
    while t >= 8:
        if M % t == 0:
            return t
        t //= 2
    return M


# ---------------------------------------------------------------------------
# Pallas kernels
# ---------------------------------------------------------------------------

def _layernorm_kernel(x_ref, g_ref, b_ref, o_ref, *, eps):
    x = x_ref[...]
    mu = jnp.mean(x, axis=-1, keepdims=True)
    xc = x - mu
    var = jnp.mean(xc * xc, axis=-1, keepdims=True)
    inv = jax.lax.rsqrt(var + eps)
    o_ref[...] = (xc * inv * g_ref[...] + b_ref[...]).astype(o_ref.dtype)


def layernorm(x, g, b, eps=LN_EPS):
    M, H = x.shape
    tm = _pick_tile_m(M)
    kernel = functools.partial(_layernorm_kernel, eps=eps)
    return pl.pallas_call(
        kernel,
        out_shape=jax.ShapeDtypeStruct((M, H), jnp.float32),
        grid=(M // tm,),
        in_specs=[pl.BlockSpec((tm, H), lambda i: (i, 0)),
                  pl.BlockSpec((1, H), lambda i: (0, 0)),
                  pl.BlockSpec((1, H), lambda i: (0, 0))],
        out_specs=pl.BlockSpec((tm, H), lambda i: (i, 0)),
        compiler_params=pltpu.CompilerParams(dimension_semantics=("parallel",)),
    )(x, g, b)


def _attn_block_kernel(x_ref, mask_ref, wqkv_ref, bqkv_ref, wo_ref, bo_ref,
                       g_ref, b_ref, o_ref, *, n_heads, scale, eps):
    """Per-batch fused: QKV proj -> multi-head attention -> out proj -> +residual -> LN."""
    x = x_ref[0]                                             # (S, H) f32
    H = wo_ref.shape[0]
    Dh = H // n_heads

    # Fused QKV projection: (S, 3H) in one MXU pass (lane-dense, fills wide MXU).
    qkv = jnp.dot(x.astype(jnp.bfloat16), wqkv_ref[...],
                  preferred_element_type=jnp.float32) + bqkv_ref[...]

    m = mask_ref[0]                                          # (1, S) float mask
    wo = wo_ref[...]                                         # (H, H) bf16

    # Per-head attention; heads are static lane-axis slices (no transposes),
    # output projection is folded per-head: ctx @ Wo == sum_h ctx_h @ Wo[h*Dh:(h+1)*Dh].
    attn = None
    for h in range(n_heads):
        q_h = qkv[:, h * Dh:(h + 1) * Dh].astype(jnp.bfloat16)
        k_h = qkv[:, H + h * Dh:H + (h + 1) * Dh].astype(jnp.bfloat16)
        v_h = qkv[:, 2 * H + h * Dh:2 * H + (h + 1) * Dh].astype(jnp.bfloat16)

        s = jax.lax.dot_general(q_h, k_h, (((1,), (1,)), ((), ())),
                                preferred_element_type=jnp.float32) * scale  # (S, S)
        s = jnp.where(m > 0, s, jnp.float32(-1e30))
        s = s - jnp.max(s, axis=-1, keepdims=True)
        p = jnp.exp(s)
        p = p * pl.reciprocal(jnp.sum(p, axis=-1, keepdims=True), approx=True)

        ctx_h = jnp.dot(p.astype(jnp.bfloat16), v_h,
                        preferred_element_type=jnp.float32)                 # (S, Dh)
        contrib = jnp.dot(ctx_h.astype(jnp.bfloat16), wo[h * Dh:(h + 1) * Dh, :],
                          preferred_element_type=jnp.float32)               # (S, H)
        attn = contrib if attn is None else attn + contrib

    # Residual + sa_layer_norm (f32 statistics).
    y = x + attn + bo_ref[...]
    mu = jnp.mean(y, axis=-1, keepdims=True)
    yc = y - mu
    var = jnp.mean(yc * yc, axis=-1, keepdims=True)
    inv = jax.lax.rsqrt(var + eps)
    o_ref[0] = (yc * inv * g_ref[...] + b_ref[...]).astype(o_ref.dtype)


def attention_block(x, mask3, wqkv, bqkv, wo, bo, g, b, *, n_heads, scale):
    B, S, H = x.shape
    kernel = functools.partial(_attn_block_kernel, n_heads=n_heads, scale=scale, eps=LN_EPS)
    return pl.pallas_call(
        kernel,
        out_shape=jax.ShapeDtypeStruct((B, S, H), jnp.float32),
        grid=(B,),
        in_specs=[pl.BlockSpec((1, S, H), lambda bi: (bi, 0, 0)),
                  pl.BlockSpec((1, 1, S), lambda bi: (bi, 0, 0)),
                  pl.BlockSpec((H, 3 * H), lambda bi: (0, 0)),
                  pl.BlockSpec((1, 3 * H), lambda bi: (0, 0)),
                  pl.BlockSpec((H, H), lambda bi: (0, 0)),
                  pl.BlockSpec((1, H), lambda bi: (0, 0)),
                  pl.BlockSpec((1, H), lambda bi: (0, 0)),
                  pl.BlockSpec((1, H), lambda bi: (0, 0))],
        out_specs=pl.BlockSpec((1, S, H), lambda bi: (bi, 0, 0)),
        compiler_params=pltpu.CompilerParams(dimension_semantics=("parallel",)),
    )(x, mask3, wqkv, bqkv, wo, bo, g, b)


def _ffn_block_kernel(x_ref, w1_ref, b1_ref, w2_ref, b2_ref, g_ref, b_ref, o_ref, *, eps):
    """Fused: FFN1 -> GELU -> FFN2 -> +residual -> output_layer_norm."""
    x = x_ref[...]                                           # (tm, H) f32
    h = jnp.dot(x.astype(jnp.bfloat16), w1_ref[...],
                preferred_element_type=jnp.float32) + b1_ref[...]
    # TODO(synk): exact erf-GELU (HF DistilBERT) approximated with tanh-GELU for Mosaic lowering.
    h = 0.5 * h * (1.0 + jnp.tanh(0.7978845608028654 * (h + 0.044715 * h * h * h)))
    y = jnp.dot(h.astype(jnp.bfloat16), w2_ref[...],
                preferred_element_type=jnp.float32) + b2_ref[...]
    y = x + y
    mu = jnp.mean(y, axis=-1, keepdims=True)
    yc = y - mu
    var = jnp.mean(yc * yc, axis=-1, keepdims=True)
    inv = jax.lax.rsqrt(var + eps)
    o_ref[...] = (yc * inv * g_ref[...] + b_ref[...]).astype(o_ref.dtype)


def ffn_block(x, w1, b1, w2, b2, g, b, eps=LN_EPS):
    M, H = x.shape
    F = w1.shape[1]
    tm = _pick_tile_m(M)
    kernel = functools.partial(_ffn_block_kernel, eps=eps)
    return pl.pallas_call(
        kernel,
        out_shape=jax.ShapeDtypeStruct((M, H), jnp.float32),
        grid=(M // tm,),
        in_specs=[pl.BlockSpec((tm, H), lambda i: (i, 0)),
                  pl.BlockSpec((H, F), lambda i: (0, 0)),
                  pl.BlockSpec((1, F), lambda i: (0, 0)),
                  pl.BlockSpec((F, H), lambda i: (0, 0)),
                  pl.BlockSpec((1, H), lambda i: (0, 0)),
                  pl.BlockSpec((1, H), lambda i: (0, 0)),
                  pl.BlockSpec((1, H), lambda i: (0, 0))],
        out_specs=pl.BlockSpec((tm, H), lambda i: (i, 0)),
        compiler_params=pltpu.CompilerParams(dimension_semantics=("parallel",)),
    )(x, w1, b1, w2, b2, g, b)


def _head_kernel(x_ref, w1_ref, b1_ref, w2_ref, b2_ref, o_ref):
    """pre_classifier -> ReLU -> (dropout = identity) -> classifier (lane-padded) -> sigmoid."""
    x = x_ref[...].astype(jnp.bfloat16)
    h = jnp.dot(x, w1_ref[...], preferred_element_type=jnp.float32) + b1_ref[...]
    h = jnp.maximum(h, 0.0)
    y = jnp.dot(h.astype(jnp.bfloat16), w2_ref[...],
                preferred_element_type=jnp.float32) + b2_ref[...]
    o_ref[...] = (1.0 / (1.0 + jnp.exp(-y))).astype(o_ref.dtype)


def classifier_head(pooler, w1, b1, w2_pad, b2_pad):
    B, H = pooler.shape
    N = w2_pad.shape[1]  # lane-dense padded width (128); only column 0 is real
    return pl.pallas_call(
        _head_kernel,
        out_shape=jax.ShapeDtypeStruct((B, N), jnp.float32),
        grid=(1,),
        in_specs=[pl.BlockSpec((B, H), lambda i: (0, 0)),
                  pl.BlockSpec((H, H), lambda i: (0, 0)),
                  pl.BlockSpec((1, H), lambda i: (0, 0)),
                  pl.BlockSpec((H, N), lambda i: (0, 0)),
                  pl.BlockSpec((1, N), lambda i: (0, 0))],
        out_specs=pl.BlockSpec((B, N), lambda i: (0, 0)),
    )(pooler, w1, b1, w2_pad, b2_pad)


# ---------------------------------------------------------------------------
# Parameter initialization (deterministic, synthetic)
# ---------------------------------------------------------------------------

def init_params(key, vocab, max_pos, H, ffn, n_layers):
    keys = iter(jax.random.split(key, 8 + 4 * n_layers))

    def nrm(shape, dtype=jnp.float32):
        return (0.02 * jax.random.normal(next(keys), shape)).astype(dtype)

    def zeros(shape, dtype=jnp.float32):
        return jnp.zeros(shape, dtype)

    def ones(shape):
        return jnp.ones(shape, jnp.float32)

    W = jnp.bfloat16  # matmul weights in bf16: halves HBM traffic, 2x MXU on v6e/v7x

    params = {
        "word_emb": nrm((vocab, H)),
        "pos_emb": nrm((max_pos, H)),
        "emb_ln_g": ones((1, H)), "emb_ln_b": zeros((1, H)),
        "layers": [],
        "pre_w": nrm((H, H), W), "pre_b": zeros((1, H)),
        # classifier weight padded to 128 lanes for a lane-dense output store;
        # only column 0 is the real (H, 1) classifier.
        "cls_w_pad": jnp.pad(nrm((H, 1)), ((0, 0), (0, CLS_PAD - 1))).astype(W),
        "cls_b_pad": zeros((1, CLS_PAD)),
    }
    for _ in range(n_layers):
        params["layers"].append({
            "qkv_w": nrm((H, 3 * H), W), "qkv_b": zeros((1, 3 * H)),   # fused Q|K|V
            "o_w": nrm((H, H), W), "o_b": zeros((1, H)),
            "ln1_g": ones((1, H)), "ln1_b": zeros((1, H)),
            "ffn1_w": nrm((H, ffn), W), "ffn1_b": zeros((1, ffn)),
            "ffn2_w": nrm((ffn, H), W), "ffn2_b": zeros((1, H)),
            "ln2_g": ones((1, H)), "ln2_b": zeros((1, H)),
        })
    return params


# ---------------------------------------------------------------------------
# Forward pass (= DistilBertClass.forward)
# ---------------------------------------------------------------------------

def distilbert_class_forward(params, input_ids, attention_mask, *, n_heads):
    B, S = input_ids.shape
    H = params["word_emb"].shape[1]
    Dh = H // n_heads
    scale = 1.0 / (Dh ** 0.5)

    # --- DistilBERT embeddings (gather is XLA glue, LayerNorm is a Pallas kernel)
    we = jnp.take(params["word_emb"], input_ids, axis=0)              # (B, S, H)
    pe = params["pos_emb"][:S][None, :, :]                            # (1, S, H)
    x = (we + pe).reshape(B * S, H)
    x = layernorm(x, params["emb_ln_g"], params["emb_ln_b"]).reshape(B, S, H)
    # embedding dropout: identity (eval mode)

    mask3 = attention_mask.astype(jnp.float32).reshape(B, 1, S)

    # --- transformer layers: 2 fused pallas_calls per layer
    for lp in params["layers"]:
        x = attention_block(x, mask3, lp["qkv_w"], lp["qkv_b"], lp["o_w"], lp["o_b"],
                            lp["ln1_g"], lp["ln1_b"], n_heads=n_heads, scale=scale)
        xf = ffn_block(x.reshape(B * S, H), lp["ffn1_w"], lp["ffn1_b"],
                       lp["ffn2_w"], lp["ffn2_b"], lp["ln2_g"], lp["ln2_b"])
        x = xf.reshape(B, S, H)
        # attention / FFN dropouts: identity (eval mode)

    # --- classification head (fused Pallas kernel, lane-dense padded output)
    pooler = x[:, 0]                                                  # CLS token, (B, H)
    out_pad = classifier_head(pooler, params["pre_w"], params["pre_b"],
                              params["cls_w_pad"], params["cls_b_pad"])  # (B, 128)
    return out_pad[:, :1]                                             # (B, 1) sigmoid probs


# ---------------------------------------------------------------------------

if __name__ == "__main__":
    key = jax.random.PRNGKey(0)
    B, S = 2, 8
    vocab, max_pos, H, n_heads, ffn, n_layers = 100, 16, 128, 4, 256, 2

    pkey, ikey = jax.random.split(key)
    params = init_params(pkey, vocab, max_pos, H, ffn, n_layers)

    input_ids = jax.random.randint(ikey, (B, S), 0, vocab, dtype=jnp.int32)
    attention_mask = jnp.ones((B, S), jnp.int32).at[1, 6:].set(0)  # pad last 2 tokens of ex.1

    fwd = jax.jit(functools.partial(distilbert_class_forward, n_heads=n_heads))
    out = fwd(params, input_ids, attention_mask)
    out = jax.block_until_ready(out)

    assert out.shape == (B, 1)
    assert bool(jnp.all((out >= 0.0) & (out <= 1.0)))
    print("KERNEL_OK")
</pallas_src>

<mosaic_0001>
module attributes {stable_mosaic.version = 11 : i64} {
  func.func @_attn_block_kernel(%arg0: i32, %arg1: memref<1x8x128xf32, #tpu.memory_space<vmem>>, %arg2: memref<1x1x8xf32, #tpu.memory_space<vmem>>, %arg3: memref<128x384xbf16, #tpu.memory_space<vmem>>, %arg4: memref<1x384xf32, #tpu.memory_space<vmem>>, %arg5: memref<128x128xbf16, #tpu.memory_space<vmem>>, %arg6: memref<1x128xf32, #tpu.memory_space<vmem>>, %arg7: memref<1x128xf32, #tpu.memory_space<vmem>>, %arg8: memref<1x128xf32, #tpu.memory_space<vmem>>, %arg9: memref<1x8x128xf32, #tpu.memory_space<vmem>>) attributes {dimension_semantics = [#tpu.dimension_semantics<parallel>], iteration_bounds = array<i64: 2>, scalar_prefetch = 0 : i64, scratch_operands = 0 : i64, tpu.core_type = #tpu.core_type<tc>, window_params = [{transform_indices = @transform_0, window_bounds = array<i64: 1, 8, 128>}, {transform_indices = @transform_1, window_bounds = array<i64: 1, 1, 8>}, {pipeline_mode = #tpu.pipeline_mode<synchronous>, transform_indices = @transform_2, window_bounds = array<i64: 128, 384>}, {pipeline_mode = #tpu.pipeline_mode<synchronous>, transform_indices = @transform_3, window_bounds = array<i64: 1, 384>}, {pipeline_mode = #tpu.pipeline_mode<synchronous>, transform_indices = @transform_4, window_bounds = array<i64: 128, 128>}, {pipeline_mode = #tpu.pipeline_mode<synchronous>, transform_indices = @transform_5, window_bounds = array<i64: 1, 128>}, {pipeline_mode = #tpu.pipeline_mode<synchronous>, transform_indices = @transform_6, window_bounds = array<i64: 1, 128>}, {pipeline_mode = #tpu.pipeline_mode<synchronous>, transform_indices = @transform_7, window_bounds = array<i64: 1, 128>}, {transform_indices = @transform_8, window_bounds = array<i64: 1, 8, 128>}]} {
    %c0 = arith.constant 0 : index
    %c0_0 = arith.constant 0 : index
    %c0_1 = arith.constant 0 : index
    %0 = vector.load %arg1[%c0, %c0_0, %c0_1] : memref<1x8x128xf32, #tpu.memory_space<vmem>>, vector<1x8x128xf32>
    %1 = vector.shape_cast %0 : vector<1x8x128xf32> to vector<8x128xf32>
    %2 = arith.truncf %1 : vector<8x128xf32> to vector<8x128xbf16>
    %c0_2 = arith.constant 0 : index
    %c0_3 = arith.constant 0 : index
    %3 = vector.load %arg3[%c0_2, %c0_3] : memref<128x384xbf16, #tpu.memory_space<vmem>>, vector<128x384xbf16>
    %cst = arith.constant dense<0.000000e+00> : vector<8x384xf32>
    %4 = tpu.matmul %2, %3, %cst {dimension_numbers = #tpu.dot_dimension_numbers<[1], [0], [0], [1], [0, 0, 1, 1], [], []>} : vector<8x128xbf16>, vector<128x384xbf16>, vector<8x384xf32> -> vector<8x384xf32>
    %c0_4 = arith.constant 0 : index
    %c0_5 = arith.constant 0 : index
    %5 = vector.load %arg4[%c0_4, %c0_5] : memref<1x384xf32, #tpu.memory_space<vmem>>, vector<1x384xf32>
    %6 = vector.broadcast %5 : vector<1x384xf32> to vector<8x384xf32>
    %7 = arith.addf %4, %6 : vector<8x384xf32>
    %c0_6 = arith.constant 0 : index
    %c0_7 = arith.constant 0 : index
    %c0_8 = arith.constant 0 : index
    %8 = vector.load %arg2[%c0_6, %c0_7, %c0_8] : memref<1x1x8xf32, #tpu.memory_space<vmem>>, vector<1x1x8xf32>
    %9 = vector.shape_cast %8 : vector<1x1x8xf32> to vector<1x8xf32>
    %c0_9 = arith.constant 0 : index
    %c0_10 = arith.constant 0 : index
    %10 = vector.load %arg5[%c0_9, %c0_10] : memref<128x128xbf16, #tpu.memory_space<vmem>>, vector<128x128xbf16>
    %11 = vector.extract_strided_slice %7 {offsets = [0, 0], sizes = [8, 32], strides = [1, 1]} : vector<8x384xf32> to vector<8x32xf32>
    %12 = arith.truncf %11 : vector<8x32xf32> to vector<8x32xbf16>
    %13 = vector.extract_strided_slice %7 {offsets = [0, 128], sizes = [8, 32], strides = [1, 1]} : vector<8x384xf32> to vector<8x32xf32>
    %14 = arith.truncf %13 : vector<8x32xf32> to vector<8x32xbf16>
    %15 = vector.extract_strided_slice %7 {offsets = [0, 256], sizes = [8, 32], strides = [1, 1]} : vector<8x384xf32> to vector<8x32xf32>
    %16 = arith.truncf %15 : vector<8x32xf32> to vector<8x32xbf16>
    %cst_11 = arith.constant dense<0.000000e+00> : vector<8x8xf32>
    %17 = tpu.matmul %12, %14, %cst_11 {dimension_numbers = #tpu.dot_dimension_numbers<[1], [1], [0], [0], [0, 0, 1, 0], [], []>} : vector<8x32xbf16>, vector<8x32xbf16>, vector<8x8xf32> -> vector<8x8xf32>
    %cst_12 = arith.constant 0.176776692 : f32
    %18 = vector.broadcast %cst_12 : f32 to vector<8x8xf32>
    %19 = arith.mulf %17, %18 : vector<8x8xf32>
    %cst_13 = arith.constant 0.000000e+00 : f32
    %20 = vector.broadcast %cst_13 : f32 to vector<1x8xf32>
    %21 = arith.cmpf ogt, %9, %20 : vector<1x8xf32>
    %cst_14 = arith.constant -1.000000e+30 : f32
    %22 = vector.shape_cast %21 : vector<1x8xi1> to vector<1x8xi1>
    %23 = vector.broadcast %22 : vector<1x8xi1> to vector<8x8xi1>
    %24 = vector.broadcast %cst_14 : f32 to vector<8x8xf32>
    %25 = arith.select %23, %19, %24 : vector<8x8xi1>, vector<8x8xf32>
    %cst_15 = arith.constant dense<0xFF800000> : vector<8xf32>
    %26 = vector.multi_reduction <maximumf>, %25, %cst_15 [1] : vector<8x8xf32> to vector<8xf32>
    %27 = vector.shape_cast %26 : vector<8xf32> to vector<8x1xf32>
    %28 = vector.broadcast %27 : vector<8x1xf32> to vector<8x8xf32>
    %29 = arith.subf %25, %28 : vector<8x8xf32>
    %30 = math.exp %29 : vector<8x8xf32>
    %cst_16 = arith.constant dense<0.000000e+00> : vector<8xf32>
    %31 = vector.multi_reduction <add>, %30, %cst_16 [1] : vector<8x8xf32> to vector<8xf32>
    %32 = vector.shape_cast %31 : vector<8xf32> to vector<8x1xf32>
    %33 = tpu.reciprocal %32 {approx = true} : vector<8x1xf32> -> vector<8x1xf32>
    %34 = vector.broadcast %33 : vector<8x1xf32> to vector<8x8xf32>
    %35 = arith.mulf %30, %34 : vector<8x8xf32>
    %36 = arith.truncf %35 : vector<8x8xf32> to vector<8x8xbf16>
    %cst_17 = arith.constant dense<0.000000e+00> : vector<8x32xf32>
    %37 = tpu.matmul %36, %16, %cst_17 {dimension_numbers = #tpu.dot_dimension_numbers<[1], [0], [0], [1], [0, 0, 1, 1], [], []>} : vector<8x8xbf16>, vector<8x32xbf16>, vector<8x32xf32> -> vector<8x32xf32>
    %38 = arith.truncf %37 : vector<8x32xf32> to vector<8x32xbf16>
    %39 = vector.extract_strided_slice %10 {offsets = [0, 0], sizes = [32, 128], strides = [1, 1]} : vector<128x128xbf16> to vector<32x128xbf16>
    %cst_18 = arith.constant dense<0.000000e+00> : vector<8x128xf32>
    %40 = tpu.matmul %38, %39, %cst_18 {dimension_numbers = #tpu.dot_dimension_numbers<[1], [0], [0], [1], [0, 0, 1, 1], [], []>} : vector<8x32xbf16>, vector<32x128xbf16>, vector<8x128xf32> -> vector<8x128xf32>
    %41 = vector.extract_strided_slice %7 {offsets = [0, 32], sizes = [8, 32], strides = [1, 1]} : vector<8x384xf32> to vector<8x32xf32>
    %42 = arith.truncf %41 : vector<8x32xf32> to vector<8x32xbf16>
    %43 = vector.extract_strided_slice %7 {offsets = [0, 160], sizes = [8, 32], strides = [1, 1]} : vector<8x384xf32> to vector<8x32xf32>
    %44 = arith.truncf %43 : vector<8x32xf32> to vector<8x32xbf16>
    %45 = vector.extract_strided_slice %7 {offsets = [0, 288], sizes = [8, 32], strides = [1, 1]} : vector<8x384xf32> to vector<8x32xf32>
    %46 = arith.truncf %45 : vector<8x32xf32> to vector<8x32xbf16>
    %cst_19 = arith.constant dense<0.000000e+00> : vector<8x8xf32>
    %47 = tpu.matmul %42, %44, %cst_19 {dimension_numbers = #tpu.dot_dimension_numbers<[1], [1], [0], [0], [0, 0, 1, 0], [], []>} : vector<8x32xbf16>, vector<8x32xbf16>, vector<8x8xf32> -> vector<8x8xf32>
    %cst_20 = arith.constant 0.176776692 : f32
    %48 = vector.broadcast %cst_20 : f32 to vector<8x8xf32>
    %49 = arith.mulf %47, %48 : vector<8x8xf32>
    %cst_21 = arith.constant 0.000000e+00 : f32
    %50 = vector.broadcast %cst_21 : f32 to vector<1x8xf32>
    %51 = arith.cmpf ogt, %9, %50 : vector<1x8xf32>
    %cst_22 = arith.constant -1.000000e+30 : f32
    %52 = vector.shape_cast %51 : vector<1x8xi1> to vector<1x8xi1>
    %53 = vector.broadcast %52 : vector<1x8xi1> to vector<8x8xi1>
    %54 = vector.broadcast %cst_22 : f32 to vector<8x8xf32>
    %55 = arith.select %53, %49, %54 : vector<8x8xi1>, vector<8x8xf32>
    %cst_23 = arith.constant dense<0xFF800000> : vector<8xf32>
    %56 = vector.multi_reduction <maximumf>, %55, %cst_23 [1] : vector<8x8xf32> to vector<8xf32>
    %57 = vector.shape_cast %56 : vector<8xf32> to vector<8x1xf32>
    %58 = vector.broadcast %57 : vector<8x1xf32> to vector<8x8xf32>
    %59 = arith.subf %55, %58 : vector<8x8xf32>
    %60 = math.exp %59 : vector<8x8xf32>
    %cst_24 = arith.constant dense<0.000000e+00> : vector<8xf32>
    %61 = vector.multi_reduction <add>, %60, %cst_24 [1] : vector<8x8xf32> to vector<8xf32>
    %62 = vector.shape_cast %61 : vector<8xf32> to vector<8x1xf32>
    %63 = tpu.reciprocal %62 {approx = true} : vector<8x1xf32> -> vector<8x1xf32>
    %64 = vector.broadcast %63 : vector<8x1xf32> to vector<8x8xf32>
    %65 = arith.mulf %60, %64 : vector<8x8xf32>
    %66 = arith.truncf %65 : vector<8x8xf32> to vector<8x8xbf16>
    %cst_25 = arith.constant dense<0.000000e+00> : vector<8x32xf32>
    %67 = tpu.matmul %66, %46, %cst_25 {dimension_numbers = #tpu.dot_dimension_numbers<[1], [0], [0], [1], [0, 0, 1, 1], [], []>} : vector<8x8xbf16>, vector<8x32xbf16>, vector<8x32xf32> -> vector<8x32xf32>
    %68 = arith.truncf %67 : vector<8x32xf32> to vector<8x32xbf16>
    %69 = vector.extract_strided_slice %10 {offsets = [32, 0], sizes = [32, 128], strides = [1, 1]} : vector<128x128xbf16> to vector<32x128xbf16>
    %cst_26 = arith.constant dense<0.000000e+00> : vector<8x128xf32>
    %70 = tpu.matmul %68, %69, %cst_26 {dimension_numbers = #tpu.dot_dimension_numbers<[1], [0], [0], [1], [0, 0, 1, 1], [], []>} : vector<8x32xbf16>, vector<32x128xbf16>, vector<8x128xf32> -> vector<8x128xf32>
    %71 = arith.addf %40, %70 : vector<8x128xf32>
    %72 = vector.extract_strided_slice %7 {offsets = [0, 64], sizes = [8, 32], strides = [1, 1]} : vector<8x384xf32> to vector<8x32xf32>
    %73 = arith.truncf %72 : vector<8x32xf32> to vector<8x32xbf16>
    %74 = vector.extract_strided_slice %7 {offsets = [0, 192], sizes = [8, 32], strides = [1, 1]} : vector<8x384xf32> to vector<8x32xf32>
    %75 = arith.truncf %74 : vector<8x32xf32> to vector<8x32xbf16>
    %76 = vector.extract_strided_slice %7 {offsets = [0, 320], sizes = [8, 32], strides = [1, 1]} : vector<8x384xf32> to vector<8x32xf32>
    %77 = arith.truncf %76 : vector<8x32xf32> to vector<8x32xbf16>
    %cst_27 = arith.constant dense<0.000000e+00> : vector<8x8xf32>
    %78 = tpu.matmul %73, %75, %cst_27 {dimension_numbers = #tpu.dot_dimension_numbers<[1], [1], [0], [0], [0, 0, 1, 0], [], []>} : vector<8x32xbf16>, vector<8x32xbf16>, vector<8x8xf32> -> vector<8x8xf32>
    %cst_28 = arith.constant 0.176776692 : f32
    %79 = vector.broadcast %cst_28 : f32 to vector<8x8xf32>
    %80 = arith.mulf %78, %79 : vector<8x8xf32>
    %cst_29 = arith.constant 0.000000e+00 : f32
    %81 = vector.broadcast %cst_29 : f32 to vector<1x8xf32>
    %82 = arith.cmpf ogt, %9, %81 : vector<1x8xf32>
    %cst_30 = arith.constant -1.000000e+30 : f32
    %83 = vector.shape_cast %82 : vector<1x8xi1> to vector<1x8xi1>
    %84 = vector.broadcast %83 : vector<1x8xi1> to vector<8x8xi1>
    %85 = vector.broadcast %cst_30 : f32 to vector<8x8xf32>
    %86 = arith.select %84, %80, %85 : vector<8x8xi1>, vector<8x8xf32>
    %cst_31 = arith.constant dense<0xFF800000> : vector<8xf32>
    %87 = vector.multi_reduction <maximumf>, %86, %cst_31 [1] : vector<8x8xf32> to vector<8xf32>
    %88 = vector.shape_cast %87 : vector<8xf32> to vector<8x1xf32>
    %89 = vector.broadcast %88 : vector<8x1xf32> to vector<8x8xf32>
    %90 = arith.subf %86, %89 : vector<8x8xf32>
    %91 = math.exp %90 : vector<8x8xf32>
    %cst_32 = arith.constant dense<0.000000e+00> : vector<8xf32>
    %92 = vector.multi_reduction <add>, %91, %cst_32 [1] : vector<8x8xf32> to vector<8xf32>
    %93 = vector.shape_cast %92 : vector<8xf32> to vector<8x1xf32>
    %94 = tpu.reciprocal %93 {approx = true} : vector<8x1xf32> -> vector<8x1xf32>
    %95 = vector.broadcast %94 : vector<8x1xf32> to vector<8x8xf32>
    %96 = arith.mulf %91, %95 : vector<8x8xf32>
    %97 = arith.truncf %96 : vector<8x8xf32> to vector<8x8xbf16>
    %cst_33 = arith.constant dense<0.000000e+00> : vector<8x32xf32>
    %98 = tpu.matmul %97, %77, %cst_33 {dimension_numbers = #tpu.dot_dimension_numbers<[1], [0], [0], [1], [0, 0, 1, 1], [], []>} : vector<8x8xbf16>, vector<8x32xbf16>, vector<8x32xf32> -> vector<8x32xf32>
    %99 = arith.truncf %98 : vector<8x32xf32> to vector<8x32xbf16>
    %100 = vector.extract_strided_slice %10 {offsets = [64, 0], sizes = [32, 128], strides = [1, 1]} : vector<128x128xbf16> to vector<32x128xbf16>
    %cst_34 = arith.constant dense<0.000000e+00> : vector<8x128xf32>
    %101 = tpu.matmul %99, %100, %cst_34 {dimension_numbers = #tpu.dot_dimension_numbers<[1], [0], [0], [1], [0, 0, 1, 1], [], []>} : vector<8x32xbf16>, vector<32x128xbf16>, vector<8x128xf32> -> vector<8x128xf32>
    %102 = arith.addf %71, %101 : vector<8x128xf32>
    %103 = vector.extract_strided_slice %7 {offsets = [0, 96], sizes = [8, 32], strides = [1, 1]} : vector<8x384xf32> to vector<8x32xf32>
    %104 = arith.truncf %103 : vector<8x32xf32> to vector<8x32xbf16>
    %105 = vector.extract_strided_slice %7 {offsets = [0, 224], sizes = [8, 32], strides = [1, 1]} : vector<8x384xf32> to vector<8x32xf32>
    %106 = arith.truncf %105 : vector<8x32xf32> to vector<8x32xbf16>
    %107 = vector.extract_strided_slice %7 {offsets = [0, 352], sizes = [8, 32], strides = [1, 1]} : vector<8x384xf32> to vector<8x32xf32>
    %108 = arith.truncf %107 : vector<8x32xf32> to vector<8x32xbf16>
    %cst_35 = arith.constant dense<0.000000e+00> : vector<8x8xf32>
    %109 = tpu.matmul %104, %106, %cst_35 {dimension_numbers = #tpu.dot_dimension_numbers<[1], [1], [0], [0], [0, 0, 1, 0], [], []>} : vector<8x32xbf16>, vector<8x32xbf16>, vector<8x8xf32> -> vector<8x8xf32>
    %cst_36 = arith.constant 0.176776692 : f32
    %110 = vector.broadcast %cst_36 : f32 to vector<8x8xf32>
    %111 = arith.mulf %109, %110 : vector<8x8xf32>
    %cst_37 = arith.constant 0.000000e+00 : f32
    %112 = vector.broadcast %cst_37 : f32 to vector<1x8xf32>
    %113 = arith.cmpf ogt, %9, %112 : vector<1x8xf32>
    %cst_38 = arith.constant -1.000000e+30 : f32
    %114 = vector.shape_cast %113 : vector<1x8xi1> to vector<1x8xi1>
    %115 = vector.broadcast %114 : vector<1x8xi1> to vector<8x8xi1>
    %116 = vector.broadcast %cst_38 : f32 to vector<8x8xf32>
    %117 = arith.select %115, %111, %116 : vector<8x8xi1>, vector<8x8xf32>
    %cst_39 = arith.constant dense<0xFF800000> : vector<8xf32>
    %118 = vector.multi_reduction <maximumf>, %117, %cst_39 [1] : vector<8x8xf32> to vector<8xf32>
    %119 = vector.shape_cast %118 : vector<8xf32> to vector<8x1xf32>
    %120 = vector.broadcast %119 : vector<8x1xf32> to vector<8x8xf32>
    %121 = arith.subf %117, %120 : vector<8x8xf32>
    %122 = math.exp %121 : vector<8x8xf32>
    %cst_40 = arith.constant dense<0.000000e+00> : vector<8xf32>
    %123 = vector.multi_reduction <add>, %122, %cst_40 [1] : vector<8x8xf32> to vector<8xf32>
    %124 = vector.shape_cast %123 : vector<8xf32> to vector<8x1xf32>
    %125 = tpu.reciprocal %124 {approx = true} : vector<8x1xf32> -> vector<8x1xf32>
    %126 = vector.broadcast %125 : vector<8x1xf32> to vector<8x8xf32>
    %127 = arith.mulf %122, %126 : vector<8x8xf32>
    %128 = arith.truncf %127 : vector<8x8xf32> to vector<8x8xbf16>
    %cst_41 = arith.constant dense<0.000000e+00> : vector<8x32xf32>
    %129 = tpu.matmul %128, %108, %cst_41 {dimension_numbers = #tpu.dot_dimension_numbers<[1], [0], [0], [1], [0, 0, 1, 1], [], []>} : vector<8x8xbf16>, vector<8x32xbf16>, vector<8x32xf32> -> vector<8x32xf32>
    %130 = arith.truncf %129 : vector<8x32xf32> to vector<8x32xbf16>
    %131 = vector.extract_strided_slice %10 {offsets = [96, 0], sizes = [32, 128], strides = [1, 1]} : vector<128x128xbf16> to vector<32x128xbf16>
    %cst_42 = arith.constant dense<0.000000e+00> : vector<8x128xf32>
    %132 = tpu.matmul %130, %131, %cst_42 {dimension_numbers = #tpu.dot_dimension_numbers<[1], [0], [0], [1], [0, 0, 1, 1], [], []>} : vector<8x32xbf16>, vector<32x128xbf16>, vector<8x128xf32> -> vector<8x128xf32>
    %133 = arith.addf %102, %132 : vector<8x128xf32>
    %134 = arith.addf %1, %133 : vector<8x128xf32>
    %c0_43 = arith.constant 0 : index
    %c0_44 = arith.constant 0 : index
    %135 = vector.load %arg6[%c0_43, %c0_44] : memref<1x128xf32, #tpu.memory_space<vmem>>, vector<1x128xf32>
    %136 = vector.broadcast %135 : vector<1x128xf32> to vector<8x128xf32>
    %137 = arith.addf %134, %136 : vector<8x128xf32>
    %cst_45 = arith.constant dense<0.000000e+00> : vector<8xf32>
    %138 = vector.multi_reduction <add>, %137, %cst_45 [1] : vector<8x128xf32> to vector<8xf32>
    %139 = vector.shape_cast %138 : vector<8xf32> to vector<8x1xf32>
    %cst_46 = arith.constant 1.280000e+02 : f32
    %140 = vector.broadcast %cst_46 : f32 to vector<8x1xf32>
    %141 = arith.divf %139, %140 : vector<8x1xf32>
    %142 = vector.broadcast %141 : vector<8x1xf32> to vector<8x128xf32>
    %143 = arith.subf %137, %142 : vector<8x128xf32>
    %144 = arith.mulf %143, %143 : vector<8x128xf32>
    %cst_47 = arith.constant dense<0.000000e+00> : vector<8xf32>
    %145 = vector.multi_reduction <add>, %144, %cst_47 [1] : vector<8x128xf32> to vector<8xf32>
    %146 = vector.shape_cast %145 : vector<8xf32> to vector<8x1xf32>
    %cst_48 = arith.constant 1.280000e+02 : f32
    %147 = vector.broadcast %cst_48 : f32 to vector<8x1xf32>
    %148 = arith.divf %146, %147 : vector<8x1xf32>
    %cst_49 = arith.constant 9.99999996E-13 : f32
    %149 = vector.broadcast %cst_49 : f32 to vector<8x1xf32>
    %150 = arith.addf %148, %149 : vector<8x1xf32>
    %151 = math.rsqrt %150 : vector<8x1xf32>
    %152 = vector.broadcast %151 : vector<8x1xf32> to vector<8x128xf32>
    %153 = arith.mulf %143, %152 : vector<8x128xf32>
    %c0_50 = arith.constant 0 : index
    %c0_51 = arith.constant 0 : index
    %154 = vector.load %arg7[%c0_50, %c0_51] : memref<1x128xf32, #tpu.memory_space<vmem>>, vector<1x128xf32>
    %155 = vector.broadcast %154 : vector<1x128xf32> to vector<8x128xf32>
    %156 = arith.mulf %153, %155 : vector<8x128xf32>
    %c0_52 = arith.constant 0 : index
    %c0_53 = arith.constant 0 : index
    %157 = vector.load %arg8[%c0_52, %c0_53] : memref<1x128xf32, #tpu.memory_space<vmem>>, vector<1x128xf32>
    %158 = vector.broadcast %157 : vector<1x128xf32> to vector<8x128xf32>
    %159 = arith.addf %156, %158 : vector<8x128xf32>
    %c0_54 = arith.constant 0 : index
    %c0_55 = arith.constant 0 : index
    %c0_56 = arith.constant 0 : index
    %160 = vector.load %arg9[%c0_54, %c0_55, %c0_56] : memref<1x8x128xf32, #tpu.memory_space<vmem>>, vector<1x8x128xf32>
    %161 = vector.shape_cast %160 : vector<1x8x128xf32> to vector<8x128xf32>
    %162 = vector.shape_cast %159 : vector<8x128xf32> to vector<1x8x128xf32>
    tpu.vector_store %arg9[%c0_54, %c0_55, %c0_56], %162 {strides = array<i32>} : memref<1x8x128xf32, #tpu.memory_space<vmem>>, vector<1x8x128xf32>,
    return
  }
  func.func @transform_0(%arg0: i32) -> (i32, i32, i32) {
    %c0_i32 = arith.constant 0 : i32
    %c0_i32_0 = arith.constant 0 : i32
    %c0_i32_1 = arith.constant 0 : i32
    return %arg0, %c0_i32, %c0_i32_0 : i32, i32, i32
  }
  func.func @transform_1(%arg0: i32) -> (i32, i32, i32) {
    %c0_i32 = arith.constant 0 : i32
    %c0_i32_0 = arith.constant 0 : i32
    %c0_i32_1 = arith.constant 0 : i32
    return %arg0, %c0_i32, %c0_i32_0 : i32, i32, i32
  }
  func.func @transform_2(%arg0: i32) -> (i32, i32) {
    %c0_i32 = arith.constant 0 : i32
    %c0_i32_0 = arith.constant 0 : i32
    %c0_i32_1 = arith.constant 0 : i32
    return %c0_i32, %c0_i32_0 : i32, i32
  }
  func.func @transform_3(%arg0: i32) -> (i32, i32) {
    %c0_i32 = arith.constant 0 : i32
    %c0_i32_0 = arith.constant 0 : i32
    %c0_i32_1 = arith.constant 0 : i32
    return %c0_i32, %c0_i32_0 : i32, i32
  }
  func.func @transform_4(%arg0: i32) -> (i32, i32) {
    %c0_i32 = arith.constant 0 : i32
    %c0_i32_0 = arith.constant 0 : i32
    %c0_i32_1 = arith.constant 0 : i32
    return %c0_i32, %c0_i32_0 : i32, i32
  }
  func.func @transform_5(%arg0: i32) -> (i32, i32) {
    %c0_i32 = arith.constant 0 : i32
    %c0_i32_0 = arith.constant 0 : i32
    %c0_i32_1 = arith.constant 0 : i32
    return %c0_i32, %c0_i32_0 : i32, i32
  }
  func.func @transform_6(%arg0: i32) -> (i32, i32) {
    %c0_i32 = arith.constant 0 : i32
    %c0_i32_0 = arith.constant 0 : i32
    %c0_i32_1 = arith.constant 0 : i32
    return %c0_i32, %c0_i32_0 : i32, i32
  }
  func.func @transform_7(%arg0: i32) -> (i32, i32) {
    %c0_i32 = arith.constant 0 : i32
    %c0_i32_0 = arith.constant 0 : i32
    %c0_i32_1 = arith.constant 0 : i32
    return %c0_i32, %c0_i32_0 : i32, i32
  }
  func.func @transform_8(%arg0: i32) -> (i32, i32, i32) {
    %c0_i32 = arith.constant 0 : i32
    %c0_i32_0 = arith.constant 0 : i32
    %c0_i32_1 = arith.constant 0 : i32
    return %arg0, %c0_i32, %c0_i32_0 : i32, i32, i32
  }
}

module attributes {stable_mosaic.version = 11 : i64} {
  func.func @_layernorm_kernel(%arg0: i32, %arg1: memref<16x128xf32, #tpu.memory_space<vmem>>, %arg2: memref<1x128xf32, #tpu.memory_space<vmem>>, %arg3: memref<1x128xf32, #tpu.memory_space<vmem>>, %arg4: memref<16x128xf32, #tpu.memory_space<vmem>>) attributes {dimension_semantics = [#tpu.dimension_semantics<parallel>], iteration_bounds = array<i64: 1>, scalar_prefetch = 0 : i64, scratch_operands = 0 : i64, tpu.core_type = #tpu.core_type<tc>, window_params = [{transform_indices = @transform_0, window_bounds = array<i64: 16, 128>}, {pipeline_mode = #tpu.pipeline_mode<synchronous>, transform_indices = @transform_1, window_bounds = array<i64: 1, 128>}, {pipeline_mode = #tpu.pipeline_mode<synchronous>, transform_indices = @transform_2, window_bounds = array<i64: 1, 128>}, {transform_indices = @transform_3, window_bounds = array<i64: 16, 128>}]} {
    %c0 = arith.constant 0 : index
    %c0_0 = arith.constant 0 : index
    %0 = vector.load %arg1[%c0, %c0_0] : memref<16x128xf32, #tpu.memory_space<vmem>>, vector<16x128xf32>
    %cst = arith.constant dense<0.000000e+00> : vector<16xf32>
    %1 = vector.multi_reduction <add>, %0, %cst [1] : vector<16x128xf32> to vector<16xf32>
    %2 = vector.shape_cast %1 : vector<16xf32> to vector<16x1xf32>
    %cst_1 = arith.constant 1.280000e+02 : f32
    %3 = vector.broadcast %cst_1 : f32 to vector<16x1xf32>
    %4 = arith.divf %2, %3 : vector<16x1xf32>
    %5 = vector.broadcast %4 : vector<16x1xf32> to vector<16x128xf32>
    %6 = arith.subf %0, %5 : vector<16x128xf32>
    %7 = arith.mulf %6, %6 : vector<16x128xf32>
    %cst_2 = arith.constant dense<0.000000e+00> : vector<16xf32>
    %8 = vector.multi_reduction <add>, %7, %cst_2 [1] : vector<16x128xf32> to vector<16xf32>
    %9 = vector.shape_cast %8 : vector<16xf32> to vector<16x1xf32>
    %cst_3 = arith.constant 1.280000e+02 : f32
    %10 = vector.broadcast %cst_3 : f32 to vector<16x1xf32>
    %11 = arith.divf %9, %10 : vector<16x1xf32>
    %cst_4 = arith.constant 9.99999996E-13 : f32
    %12 = vector.broadcast %cst_4 : f32 to vector<16x1xf32>
    %13 = arith.addf %11, %12 : vector<16x1xf32>
    %14 = math.rsqrt %13 : vector<16x1xf32>
    %15 = vector.broadcast %14 : vector<16x1xf32> to vector<16x128xf32>
    %16 = arith.mulf %6, %15 : vector<16x128xf32>
    %c0_5 = arith.constant 0 : index
    %c0_6 = arith.constant 0 : index
    %17 = vector.load %arg2[%c0_5, %c0_6] : memref<1x128xf32, #tpu.memory_space<vmem>>, vector<1x128xf32>
    %18 = vector.broadcast %17 : vector<1x128xf32> to vector<16x128xf32>
    %19 = arith.mulf %16, %18 : vector<16x128xf32>
    %c0_7 = arith.constant 0 : index
    %c0_8 = arith.constant 0 : index
    %20 = vector.load %arg3[%c0_7, %c0_8] : memref<1x128xf32, #tpu.memory_space<vmem>>, vector<1x128xf32>
    %21 = vector.broadcast %20 : vector<1x128xf32> to vector<16x128xf32>
    %22 = arith.addf %19, %21 : vector<16x128xf32>
    %c0_9 = arith.constant 0 : index
    %c0_10 = arith.constant 0 : index
    %23 = vector.load %arg4[%c0_9, %c0_10] : memref<16x128xf32, #tpu.memory_space<vmem>>, vector<16x128xf32>
    tpu.vector_store %arg4[%c0_9, %c0_10], %22 {strides = array<i32>} : memref<16x128xf32, #tpu.memory_space<vmem>>, vector<16x128xf32>,
    return
  }
  func.func @transform_0(%arg0: i32) -> (i32, i32) {
    %c0_i32 = arith.constant 0 : i32
    %c0_i32_0 = arith.constant 0 : i32
    return %arg0, %c0_i32 : i32, i32
  }
  func.func @transform_1(%arg0: i32) -> (i32, i32) {
    %c0_i32 = arith.constant 0 : i32
    %c0_i32_0 = arith.constant 0 : i32
    %c0_i32_1 = arith.constant 0 : i32
    return %c0_i32, %c0_i32_0 : i32, i32
  }
  func.func @transform_2(%arg0: i32) -> (i32, i32) {
    %c0_i32 = arith.constant 0 : i32
    %c0_i32_0 = arith.constant 0 : i32
    %c0_i32_1 = arith.constant 0 : i32
    return %c0_i32, %c0_i32_0 : i32, i32
  }
  func.func @transform_3(%arg0: i32) -> (i32, i32) {
    %c0_i32 = arith.constant 0 : i32
    %c0_i32_0 = arith.constant 0 : i32
    return %arg0, %c0_i32 : i32, i32
  }
}

module attributes {stable_mosaic.version = 11 : i64} {
  func.func @_head_kernel(%arg0: i32, %arg1: memref<2x128xf32, #tpu.memory_space<vmem>>, %arg2: memref<128x128xbf16, #tpu.memory_space<vmem>>, %arg3: memref<1x128xf32, #tpu.memory_space<vmem>>, %arg4: memref<128x128xbf16, #tpu.memory_space<vmem>>, %arg5: memref<1x128xf32, #tpu.memory_space<vmem>>, %arg6: memref<2x128xf32, #tpu.memory_space<vmem>>) attributes {dimension_semantics = [#tpu.dimension_semantics<arbitrary>], iteration_bounds = array<i64: 1>, scalar_prefetch = 0 : i64, scratch_operands = 0 : i64, tpu.core_type = #tpu.core_type<tc>, window_params = [{pipeline_mode = #tpu.pipeline_mode<synchronous>, transform_indices = @transform_0, window_bounds = array<i64: 2, 128>}, {pipeline_mode = #tpu.pipeline_mode<synchronous>, transform_indices = @transform_1, window_bounds = array<i64: 128, 128>}, {pipeline_mode = #tpu.pipeline_mode<synchronous>, transform_indices = @transform_2, window_bounds = array<i64: 1, 128>}, {pipeline_mode = #tpu.pipeline_mode<synchronous>, transform_indices = @transform_3, window_bounds = array<i64: 128, 128>}, {pipeline_mode = #tpu.pipeline_mode<synchronous>, transform_indices = @transform_4, window_bounds = array<i64: 1, 128>}, {pipeline_mode = #tpu.pipeline_mode<synchronous>, transform_indices = @transform_5, window_bounds = array<i64: 2, 128>}]} {
    %c0 = arith.constant 0 : index
    %c0_0 = arith.constant 0 : index
    %0 = vector.load %arg1[%c0, %c0_0] : memref<2x128xf32, #tpu.memory_space<vmem>>, vector<2x128xf32>
    %1 = arith.truncf %0 : vector<2x128xf32> to vector<2x128xbf16>
    %c0_1 = arith.constant 0 : index
    %c0_2 = arith.constant 0 : index
    %2 = vector.load %arg2[%c0_1, %c0_2] : memref<128x128xbf16, #tpu.memory_space<vmem>>, vector<128x128xbf16>
    %cst = arith.constant dense<0.000000e+00> : vector<2x128xf32>
    %3 = tpu.matmul %1, %2, %cst {dimension_numbers = #tpu.dot_dimension_numbers<[1], [0], [0], [1], [0, 0, 1, 1], [], []>} : vector<2x128xbf16>, vector<128x128xbf16>, vector<2x128xf32> -> vector<2x128xf32>
    %c0_3 = arith.constant 0 : index
    %c0_4 = arith.constant 0 : index
    %4 = vector.load %arg3[%c0_3, %c0_4] : memref<1x128xf32, #tpu.memory_space<vmem>>, vector<1x128xf32>
    %5 = vector.broadcast %4 : vector<1x128xf32> to vector<2x128xf32>
    %6 = arith.addf %3, %5 : vector<2x128xf32>
    %cst_5 = arith.constant 0.000000e+00 : f32
    %7 = vector.broadcast %cst_5 : f32 to vector<2x128xf32>
    %8 = arith.maximumf %6, %7 : vector<2x128xf32>
    %9 = arith.truncf %8 : vector<2x128xf32> to vector<2x128xbf16>
    %c0_6 = arith.constant 0 : index
    %c0_7 = arith.constant 0 : index
    %10 = vector.load %arg4[%c0_6, %c0_7] : memref<128x128xbf16, #tpu.memory_space<vmem>>, vector<128x128xbf16>
    %cst_8 = arith.constant dense<0.000000e+00> : vector<2x128xf32>
    %11 = tpu.matmul %9, %10, %cst_8 {dimension_numbers = #tpu.dot_dimension_numbers<[1], [0], [0], [1], [0, 0, 1, 1], [], []>} : vector<2x128xbf16>, vector<128x128xbf16>, vector<2x128xf32> -> vector<2x128xf32>
    %c0_9 = arith.constant 0 : index
    %c0_10 = arith.constant 0 : index
    %12 = vector.load %arg5[%c0_9, %c0_10] : memref<1x128xf32, #tpu.memory_space<vmem>>, vector<1x128xf32>
    %13 = vector.broadcast %12 : vector<1x128xf32> to vector<2x128xf32>
    %14 = arith.addf %11, %13 : vector<2x128xf32>
    %cst_11 = arith.constant 0.000000e+00 : f32
    %15 = vector.broadcast %cst_11 : f32 to vector<2x128xf32>
    %16 = arith.subf %15, %14 : vector<2x128xf32>
    %17 = math.exp %16 : vector<2x128xf32>
    %cst_12 = arith.constant 1.000000e+00 : f32
    %18 = vector.broadcast %cst_12 : f32 to vector<2x128xf32>
    %19 = arith.addf %18, %17 : vector<2x128xf32>
    %cst_13 = arith.constant 1.000000e+00 : f32
    %20 = vector.broadcast %cst_13 : f32 to vector<2x128xf32>
    %21 = arith.divf %20, %19 : vector<2x128xf32>
    %c0_14 = arith.constant 0 : index
    %c0_15 = arith.constant 0 : index
    %22 = vector.load %arg6[%c0_14, %c0_15] : memref<2x128xf32, #tpu.memory_space<vmem>>, vector<2x128xf32>
    tpu.vector_store %arg6[%c0_14, %c0_15], %21 {strides = array<i32>} : memref<2x128xf32, #tpu.memory_space<vmem>>, vector<2x128xf32>,
    return
  }
  func.func @transform_0(%arg0: i32) -> (i32, i32) {
    %c0_i32 = arith.constant 0 : i32
    %c0_i32_0 = arith.constant 0 : i32
    %c0_i32_1 = arith.constant 0 : i32
    return %c0_i32, %c0_i32_0 : i32, i32
  }
  func.func @transform_1(%arg0: i32) -> (i32, i32) {
    %c0_i32 = arith.constant 0 : i32
    %c0_i32_0 = arith.constant 0 : i32
    %c0_i32_1 = arith.constant 0 : i32
    return %c0_i32, %c0_i32_0 : i32, i32
  }
  func.func @transform_2(%arg0: i32) -> (i32, i32) {
    %c0_i32 = arith.constant 0 : i32
    %c0_i32_0 = arith.constant 0 : i32
    %c0_i32_1 = arith.constant 0 : i32
    return %c0_i32, %c0_i32_0 : i32, i32
  }
  func.func @transform_3(%arg0: i32) -> (i32, i32) {
    %c0_i32 = arith.constant 0 : i32
    %c0_i32_0 = arith.constant 0 : i32
    %c0_i32_1 = arith.constant 0 : i32
    return %c0_i32, %c0_i32_0 : i32, i32
  }
  func.func @transform_4(%arg0: i32) -> (i32, i32) {
    %c0_i32 = arith.constant 0 : i32
    %c0_i32_0 = arith.constant 0 : i32
    %c0_i32_1 = arith.constant 0 : i32
    return %c0_i32, %c0_i32_0 : i32, i32
  }
  func.func @transform_5(%arg0: i32) -> (i32, i32) {
    %c0_i32 = arith.constant 0 : i32
    %c0_i32_0 = arith.constant 0 : i32
    %c0_i32_1 = arith.constant 0 : i32
    return %c0_i32, %c0_i32_0 : i32, i32
  }
}

module attributes {stable_mosaic.version = 11 : i64} {
  func.func @_ffn_block_kernel(%arg0: i32, %arg1: memref<16x128xf32, #tpu.memory_space<vmem>>, %arg2: memref<128x256xbf16, #tpu.memory_space<vmem>>, %arg3: memref<1x256xf32, #tpu.memory_space<vmem>>, %arg4: memref<256x128xbf16, #tpu.memory_space<vmem>>, %arg5: memref<1x128xf32, #tpu.memory_space<vmem>>, %arg6: memref<1x128xf32, #tpu.memory_space<vmem>>, %arg7: memref<1x128xf32, #tpu.memory_space<vmem>>, %arg8: memref<16x128xf32, #tpu.memory_space<vmem>>) attributes {dimension_semantics = [#tpu.dimension_semantics<parallel>], iteration_bounds = array<i64: 1>, scalar_prefetch = 0 : i64, scratch_operands = 0 : i64, tpu.core_type = #tpu.core_type<tc>, window_params = [{transform_indices = @transform_0, window_bounds = array<i64: 16, 128>}, {pipeline_mode = #tpu.pipeline_mode<synchronous>, transform_indices = @transform_1, window_bounds = array<i64: 128, 256>}, {pipeline_mode = #tpu.pipeline_mode<synchronous>, transform_indices = @transform_2, window_bounds = array<i64: 1, 256>}, {pipeline_mode = #tpu.pipeline_mode<synchronous>, transform_indices = @transform_3, window_bounds = array<i64: 256, 128>}, {pipeline_mode = #tpu.pipeline_mode<synchronous>, transform_indices = @transform_4, window_bounds = array<i64: 1, 128>}, {pipeline_mode = #tpu.pipeline_mode<synchronous>, transform_indices = @transform_5, window_bounds = array<i64: 1, 128>}, {pipeline_mode = #tpu.pipeline_mode<synchronous>, transform_indices = @transform_6, window_bounds = array<i64: 1, 128>}, {transform_indices = @transform_7, window_bounds = array<i64: 16, 128>}]} {
    %c0 = arith.constant 0 : index
    %c0_0 = arith.constant 0 : index
    %0 = vector.load %arg1[%c0, %c0_0] : memref<16x128xf32, #tpu.memory_space<vmem>>, vector<16x128xf32>
    %1 = arith.truncf %0 : vector<16x128xf32> to vector<16x128xbf16>
    %c0_1 = arith.constant 0 : index
    %c0_2 = arith.constant 0 : index
    %2 = vector.load %arg2[%c0_1, %c0_2] : memref<128x256xbf16, #tpu.memory_space<vmem>>, vector<128x256xbf16>
    %cst = arith.constant dense<0.000000e+00> : vector<16x256xf32>
    %3 = tpu.matmul %1, %2, %cst {dimension_numbers = #tpu.dot_dimension_numbers<[1], [0], [0], [1], [0, 0, 1, 1], [], []>} : vector<16x128xbf16>, vector<128x256xbf16>, vector<16x256xf32> -> vector<16x256xf32>
    %c0_3 = arith.constant 0 : index
    %c0_4 = arith.constant 0 : index
    %4 = vector.load %arg3[%c0_3, %c0_4] : memref<1x256xf32, #tpu.memory_space<vmem>>, vector<1x256xf32>
    %5 = vector.broadcast %4 : vector<1x256xf32> to vector<16x256xf32>
    %6 = arith.addf %3, %5 : vector<16x256xf32>
    %cst_5 = arith.constant 5.000000e-01 : f32
    %7 = vector.broadcast %cst_5 : f32 to vector<16x256xf32>
    %8 = arith.mulf %7, %6 : vector<16x256xf32>
    %cst_6 = arith.constant 4.471500e-02 : f32
    %9 = vector.broadcast %cst_6 : f32 to vector<16x256xf32>
    %10 = arith.mulf %9, %6 : vector<16x256xf32>
    %11 = arith.mulf %10, %6 : vector<16x256xf32>
    %12 = arith.mulf %11, %6 : vector<16x256xf32>
    %13 = arith.addf %6, %12 : vector<16x256xf32>
    %cst_7 = arith.constant 0.797884583 : f32
    %14 = vector.broadcast %cst_7 : f32 to vector<16x256xf32>
    %15 = arith.mulf %14, %13 : vector<16x256xf32>
    %16 = math.tanh %15 : vector<16x256xf32>
    %cst_8 = arith.constant 1.000000e+00 : f32
    %17 = vector.broadcast %cst_8 : f32 to vector<16x256xf32>
    %18 = arith.addf %17, %16 : vector<16x256xf32>
    %19 = arith.mulf %8, %18 : vector<16x256xf32>
    %20 = arith.truncf %19 : vector<16x256xf32> to vector<16x256xbf16>
    %c0_9 = arith.constant 0 : index
    %c0_10 = arith.constant 0 : index
    %21 = vector.load %arg4[%c0_9, %c0_10] : memref<256x128xbf16, #tpu.memory_space<vmem>>, vector<256x128xbf16>
    %cst_11 = arith.constant dense<0.000000e+00> : vector<16x128xf32>
    %22 = tpu.matmul %20, %21, %cst_11 {dimension_numbers = #tpu.dot_dimension_numbers<[1], [0], [0], [1], [0, 0, 1, 1], [], []>} : vector<16x256xbf16>, vector<256x128xbf16>, vector<16x128xf32> -> vector<16x128xf32>
    %c0_12 = arith.constant 0 : index
    %c0_13 = arith.constant 0 : index
    %23 = vector.load %arg5[%c0_12, %c0_13] : memref<1x128xf32, #tpu.memory_space<vmem>>, vector<1x128xf32>
    %24 = vector.broadcast %23 : vector<1x128xf32> to vector<16x128xf32>
    %25 = arith.addf %22, %24 : vector<16x128xf32>
    %26 = arith.addf %0, %25 : vector<16x128xf32>
    %cst_14 = arith.constant dense<0.000000e+00> : vector<16xf32>
    %27 = vector.multi_reduction <add>, %26, %cst_14 [1] : vector<16x128xf32> to vector<16xf32>
    %28 = vector.shape_cast %27 : vector<16xf32> to vector<16x1xf32>
    %cst_15 = arith.constant 1.280000e+02 : f32
    %29 = vector.broadcast %cst_15 : f32 to vector<16x1xf32>
    %30 = arith.divf %28, %29 : vector<16x1xf32>
    %31 = vector.broadcast %30 : vector<16x1xf32> to vector<16x128xf32>
    %32 = arith.subf %26, %31 : vector<16x128xf32>
    %33 = arith.mulf %32, %32 : vector<16x128xf32>
    %cst_16 = arith.constant dense<0.000000e+00> : vector<16xf32>
    %34 = vector.multi_reduction <add>, %33, %cst_16 [1] : vector<16x128xf32> to vector<16xf32>
    %35 = vector.shape_cast %34 : vector<16xf32> to vector<16x1xf32>
    %cst_17 = arith.constant 1.280000e+02 : f32
    %36 = vector.broadcast %cst_17 : f32 to vector<16x1xf32>
    %37 = arith.divf %35, %36 : vector<16x1xf32>
    %cst_18 = arith.constant 9.99999996E-13 : f32
    %38 = vector.broadcast %cst_18 : f32 to vector<16x1xf32>
    %39 = arith.addf %37, %38 : vector<16x1xf32>
    %40 = math.rsqrt %39 : vector<16x1xf32>
    %41 = vector.broadcast %40 : vector<16x1xf32> to vector<16x128xf32>
    %42 = arith.mulf %32, %41 : vector<16x128xf32>
    %c0_19 = arith.constant 0 : index
    %c0_20 = arith.constant 0 : index
    %43 = vector.load %arg6[%c0_19, %c0_20] : memref<1x128xf32, #tpu.memory_space<vmem>>, vector<1x128xf32>
    %44 = vector.broadcast %43 : vector<1x128xf32> to vector<16x128xf32>
    %45 = arith.mulf %42, %44 : vector<16x128xf32>
    %c0_21 = arith.constant 0 : index
    %c0_22 = arith.constant 0 : index
    %46 = vector.load %arg7[%c0_21, %c0_22] : memref<1x128xf32, #tpu.memory_space<vmem>>, vector<1x128xf32>
    %47 = vector.broadcast %46 : vector<1x128xf32> to vector<16x128xf32>
    %48 = arith.addf %45, %47 : vector<16x128xf32>
    %c0_23 = arith.constant 0 : index
    %c0_24 = arith.constant 0 : index
    %49 = vector.load %arg8[%c0_23, %c0_24] : memref<16x128xf32, #tpu.memory_space<vmem>>, vector<16x128xf32>
    tpu.vector_store %arg8[%c0_23, %c0_24], %48 {strides = array<i32>} : memref<16x128xf32, #tpu.memory_space<vmem>>, vector<16x128xf32>,
    return
  }
  func.func @transform_0(%arg0: i32) -> (i32, i32) {
    %c0_i32 = arith.constant 0 : i32
    %c0_i32_0 = arith.constant 0 : i32
    return %arg0, %c0_i32 : i32, i32
  }
  func.func @transform_1(%arg0: i32) -> (i32, i32) {
    %c0_i32 = arith.constant 0 : i32
    %c0_i32_0 = arith.constant 0 : i32
    %c0_i32_1 = arith.constant 0 : i32
    return %c0_i32, %c0_i32_0 : i32, i32
  }
  func.func @transform_2(%arg0: i32) -> (i32, i32) {
    %c0_i32 = arith.constant 0 : i32
    %c0_i32_0 = arith.constant 0 : i32
    %c0_i32_1 = arith.constant 0 : i32
    return %c0_i32, %c0_i32_0 : i32, i32
  }
  func.func @transform_3(%arg0: i32) -> (i32, i32) {
    %c0_i32 = arith.constant 0 : i32
    %c0_i32_0 = arith.constant 0 : i32
    %c0_i32_1 = arith.constant 0 : i32
    return %c0_i32, %c0_i32_0 : i32, i32
  }
  func.func @transform_4(%arg0: i32) -> (i32, i32) {
    %c0_i32 = arith.constant 0 : i32
    %c0_i32_0 = arith.constant 0 : i32
    %c0_i32_1 = arith.constant 0 : i32
    return %c0_i32, %c0_i32_0 : i32, i32
  }
  func.func @transform_5(%arg0: i32) -> (i32, i32) {
    %c0_i32 = arith.constant 0 : i32
    %c0_i32_0 = arith.constant 0 : i32
    %c0_i32_1 = arith.constant 0 : i32
    return %c0_i32, %c0_i32_0 : i32, i32
  }
  func.func @transform_6(%arg0: i32) -> (i32, i32) {
    %c0_i32 = arith.constant 0 : i32
    %c0_i32_0 = arith.constant 0 : i32
    %c0_i32_1 = arith.constant 0 : i32
    return %c0_i32, %c0_i32_0 : i32, i32
  }
  func.func @transform_7(%arg0: i32) -> (i32, i32) {
    %c0_i32 = arith.constant 0 : i32
    %c0_i32_0 = arith.constant 0 : i32
    return %arg0, %c0_i32 : i32, i32
  }
}

</mosaic_0001>

<llo_original>
// kernel: distilbert_class_forward.6
$region0: #{distilbert_class_forward.6}
  #allocation0 [shape = 'u32[]', space=smem, size = 0x4, offset = 0x4, fixed_abs, tag = 'smem constant byte address 0x4 - core index']
  #allocation1 [shape = 'u32[144,128]{1,0:T(1,128)}', space=vmem, size = 0x12000, scoped, tag = 'internal scratch']
  %s0 = inlined_call_operand.vmem [shape: f32[16,128], index: 0, kind: input, shape index: {}]
  %s1 = inlined_call_operand.vmem [shape: f32[1,128], index: 1, kind: input, shape index: {}]
  %s2 = inlined_call_operand.vmem [shape: f32[1,128], index: 2, kind: input, shape index: {}]
  %s3 = inlined_call_operand.vmem [shape: f32[16,128], index: 3, kind: output, shape index: {}]
  %s4 = sld [smem:[#allocation0]]
  $region22: #{distilbert_class_forward.6} parent=0
    _
  %s6 = ssub.s32 1, %s4
  %s7 = scalar_select 0, %s6, %s4
  // Predicated region
  $region2: #{distilbert_class_forward.6} parent=0 // pred_check
    _
  $region3: #{distilbert_class_forward.6} parent=0 // pred_check_branch
    %9 = sbr.rel (0) target = $region5
  $region4: #{distilbert_class_forward.6} parent=0 // pred_region
    _
  $region5: #{distilbert_class_forward.6} parent=0 // pred_fallthru
    _
  // Predicated region
  $region6: #{distilbert_class_forward.6} parent=0 // pred_check
    _
  $region7: #{distilbert_class_forward.6} parent=0 // pred_check_branch
    %11 = sbr.rel (0) target = $region9
  $region8: #{distilbert_class_forward.6} parent=0 // pred_region
    _
  $region9: #{distilbert_class_forward.6} parent=0 // pred_fallthru
    _
  // Predicated region
  $region10: #{distilbert_class_forward.6} parent=0 // pred_check
    _
  $region11: #{distilbert_class_forward.6} parent=0 // pred_check_branch
    %13 = sbr.rel (0) target = $region13
  $region12: #{distilbert_class_forward.6} parent=0 // pred_region
    _
  $region13: #{distilbert_class_forward.6} parent=0 // pred_fallthru
    _
  %v14 = vld [vmem:[%s0] sm:$0xff]
  %v15 = vld [vmem:[%s0 + $0x8] sm:$0xff]
  %16 = vadd.xlane.f32.xlu0 %v14
  %v17 = vpop.xlane.xlu0 %16
  %18 = vadd.xlane.f32.xlu0 %v15
  %v19 = vpop.xlane.xlu0 %18
  %v20 = vrcp.pop 128.0
  %v21 = vmul.f32 %v17, %v20
  %v22 = vmul.f32 %v19, %v20
  %v23 = vsub.f32 %v14, %v21
  %v24 = vsub.f32 %v15, %v22
  %v25 = vmul.f32 %v23, %v23
  %v26 = vmul.f32 %v24, %v24
  %27 = vadd.xlane.f32.xlu0 %v25
  %v28 = vpop.xlane.xlu0 %27
  %29 = vadd.xlane.f32.xlu0 %v26
  %v30 = vpop.xlane.xlu0 %29
  %v31 = vmul.f32 %v28, %v20
  %v32 = vmul.f32 %v30, %v20
  %v33 = vadd.f32 %v31, 1e-12
  %v34 = vadd.f32 %v32, 1e-12
  %v35 = vrsqrt.pop %v33
  %v36 = vrsqrt.pop %v34
  %v37 = vmul.f32 %v23, %v35
  %v38 = vmul.f32 %v24, %v36
  %v39 = vld [vmem:[%s1] sm:$0x1]
  %v41 = vlaneseq
  %v42 = vshrl.u32 %v41, 7
  %v43 = vsub.s32 0, %v42
  %v44 = vrot.slane %v39, %v43
  %v46 = vmul.f32 %v37, %v44
  %v47 = vmul.f32 %v38, %v44
  %v48 = vld [vmem:[%s2] sm:$0x1]
  %v50 = vlaneseq
  %v51 = vshrl.u32 %v50, 7
  %v52 = vsub.s32 0, %v51
  %v53 = vrot.slane %v48, %v52
  %v55 = vadd.f32 %v46, %v53
  %v56 = vadd.f32 %v47, %v53
  %57 = vst [vmem:[%s3] sm:$0xff] %v55
  %58 = vst [vmem:[%s3 + $0x8] sm:$0xff] %v56
  // Predicated region
  $region14: #{distilbert_class_forward.6} parent=0 // pred_check
    _
  $region15: #{distilbert_class_forward.6} parent=0 // pred_check_branch
    %60 = sbr.rel (0) target = $region17
  $region16: #{distilbert_class_forward.6} parent=0 // pred_region
    _
  $region17: #{distilbert_class_forward.6} parent=0 // pred_fallthru
    _
  // Predicated region
  $region18: #{distilbert_class_forward.6} parent=0 // pred_check
    _
  $region19: #{distilbert_class_forward.6} parent=0 // pred_check_branch
    %62 = sbr.rel (0) target = $region21
  $region20: #{distilbert_class_forward.6} parent=0 // pred_region
    _
  $region21: #{distilbert_class_forward.6} parent=0 // pred_fallthru
    _

// kernel: distilbert_class_forward.11
$region0: #{distilbert_class_forward.11}
  #allocation0 [shape = 'u32[]', space=smem, size = 0x4, offset = 0x4, fixed_abs, tag = 'smem constant byte address 0x4 - core index']
  #allocation1 [shape = 'u32[144,128]{1,0:T(1,128)}', space=vmem, size = 0x12000, scoped, tag = 'internal scratch']
  %s0 = inlined_call_operand.vmem [shape: f32[2,128], index: 0, kind: input, shape index: {}]
  %s1 = inlined_call_operand.vmem [shape: bf16[128,128], index: 1, kind: input, shape index: {}]
  %s2 = inlined_call_operand.vmem [shape: f32[1,128], index: 2, kind: input, shape index: {}]
  %s3 = inlined_call_operand.vmem [shape: bf16[128,128], index: 3, kind: input, shape index: {}]
  %s4 = inlined_call_operand.vmem [shape: f32[1,128], index: 4, kind: input, shape index: {}]
  %s5 = inlined_call_operand.vmem [shape: f32[2,128], index: 5, kind: output, shape index: {}]
  %s6 = sld [smem:[#allocation0]]
  $region30: #{distilbert_class_forward.11} parent=0
    _
  %s8 = ssub.s32 1, %s6
  %s9 = scalar_select 0, %s8, %s6
  // Predicated region
  $region2: #{distilbert_class_forward.11} parent=0 // pred_check
    _
  $region3: #{distilbert_class_forward.11} parent=0 // pred_check_branch
    %11 = sbr.rel (0) target = $region5
  $region4: #{distilbert_class_forward.11} parent=0 // pred_region
    _
  $region5: #{distilbert_class_forward.11} parent=0 // pred_fallthru
    _
  // Predicated region
  $region6: #{distilbert_class_forward.11} parent=0 // pred_check
    _
  $region7: #{distilbert_class_forward.11} parent=0 // pred_check_branch
    %13 = sbr.rel (0) target = $region9
  $region8: #{distilbert_class_forward.11} parent=0 // pred_region
    _
  $region9: #{distilbert_class_forward.11} parent=0 // pred_fallthru
    _
  // Predicated region
  $region10: #{distilbert_class_forward.11} parent=0 // pred_check
    _
  $region11: #{distilbert_class_forward.11} parent=0 // pred_check_branch
    %15 = sbr.rel (0) target = $region13
  $region12: #{distilbert_class_forward.11} parent=0 // pred_region
    _
  $region13: #{distilbert_class_forward.11} parent=0 // pred_fallthru
    _
  // Predicated region
  $region14: #{distilbert_class_forward.11} parent=0 // pred_check
    _
  $region15: #{distilbert_class_forward.11} parent=0 // pred_check_branch
    %17 = sbr.rel (0) target = $region17
  $region16: #{distilbert_class_forward.11} parent=0 // pred_region
    _
  $region17: #{distilbert_class_forward.11} parent=0 // pred_fallthru
    _
  // Predicated region
  $region18: #{distilbert_class_forward.11} parent=0 // pred_check
    _
  $region19: #{distilbert_class_forward.11} parent=0 // pred_check_branch
    %19 = sbr.rel (0) target = $region21
  $region20: #{distilbert_class_forward.11} parent=0 // pred_region
    _
  $region21: #{distilbert_class_forward.11} parent=0 // pred_fallthru
    _
  %v21 = vld [vmem:[%s0] sm:$0x3]
  %v22 = vpack.c.bf16 %v21, %v21
  %v23 = vld [vmem:[%s1] sm:$0xf]
  %v24 = vld [vmem:[%s1 + $0x4] sm:$0xf]
  %v25 = vld [vmem:[%s1 + $0x8] sm:$0xf]
  %v26 = vld [vmem:[%s1 + $0xc] sm:$0xf]
  %v27 = vld [vmem:[%s1 + $0x10] sm:$0xf]
  %v28 = vld [vmem:[%s1 + $0x14] sm:$0xf]
  %v29 = vld [vmem:[%s1 + $0x18] sm:$0xf]
  %v30 = vld [vmem:[%s1 + $0x1c] sm:$0xf]
  %v31 = vld [vmem:[%s1 + $0x20] sm:$0xf]
  %v32 = vld [vmem:[%s1 + $0x24] sm:$0xf]
  %v33 = vld [vmem:[%s1 + $0x28] sm:$0xf]
  %v34 = vld [vmem:[%s1 + $0x2c] sm:$0xf]
  %v35 = vld [vmem:[%s1 + $0x30] sm:$0xf]
  %v36 = vld [vmem:[%s1 + $0x34] sm:$0xf]
  %v37 = vld [vmem:[%s1 + $0x38] sm:$0xf]
  %v38 = vld [vmem:[%s1 + $0x3c] sm:$0xf]
  %v39 = vld [vmem:[%s2] sm:$0x1]
  %v41 = vlaneseq
  %v42 = vshrl.u32 %v41, 7
  %v43 = vsub.s32 0, %v42
  %v44 = vrot.slane %v39, %v43
  %v62 = vunpack.c.l.b16 %v23
  %v63 = vunpack.c.l.b16 %v24
  %v64 = vunpack.c.l.b16 %v25
  %v65 = vunpack.c.l.b16 %v26
  %v66 = vunpack.c.l.b16 %v27
  %v67 = vunpack.c.l.b16 %v28
  %v68 = vunpack.c.l.b16 %v29
  %v69 = vunpack.c.l.b16 %v30
  %v70 = vunpack.c.l.b16 %v31
  %v71 = vunpack.c.l.b16 %v32
  %v72 = vunpack.c.l.b16 %v33
  %v73 = vunpack.c.l.b16 %v34
  %v74 = vunpack.c.l.b16 %v35
  %v75 = vunpack.c.l.b16 %v36
  %v76 = vunpack.c.l.b16 %v37
  %v77 = vunpack.c.l.b16 %v38
  %v78 = vpack.c.b16 %v63, %v62
  %v79 = vpack.c.b16 %v65, %v64
  %v80 = vpack.c.b16 %v67, %v66
  %v81 = vpack.c.b16 %v69, %v68
  %v82 = vpack.c.b16 %v71, %v70
  %v83 = vpack.c.b16 %v73, %v72
  %v84 = vpack.c.b16 %v75, %v74
  %v85 = vpack.c.b16 %v77, %v76
  %94 = vmatprep.subr.bf16.mxu0 0
  %95 = vmatpush1.bf16.msra.mxu0 %v78
  %96 = vmatprep.subr.bf16.mxu0 0
  %97 = vmatpush1.bf16.msra.mxu0 %v79
  %98 = vmatprep.subr.bf16.mxu0 0
  %99 = vmatpush1.bf16.msra.mxu0 %v80
  %100 = vmatprep.subr.bf16.mxu0 0
  %101 = vmatpush1.bf16.msra.mxu0 %v81
  %102 = vmatprep.subr.bf16.mxu0 0
  %103 = vmatpush1.bf16.msra.mxu0 %v82
  %104 = vmatprep.subr.bf16.mxu0 0
  %105 = vmatpush1.bf16.msra.mxu0 %v83
  %106 = vmatprep.subr.bf16.mxu0 0
  %107 = vmatpush1.bf16.msra.mxu0 %v84
  %108 = vmatprep.subr.bf16.mxu0 0
  %109 = vmatpush1.bf16.msra.mxu0 %v85
  %110 = vmatprep.subr.bf16.mxu0 0
  %111 = vmatpush1.bf16.msra.mxu0 0
  %112 = vmatprep.subr.bf16.mxu0 0
  %113 = vmatpush1.bf16.msra.mxu0 0
  %114 = vmatprep.subr.bf16.mxu0 0
  %115 = vmatpush1.bf16.msra.mxu0 0
  %116 = vmatprep.subr.bf16.mxu0 0
  %117 = vmatpush1.bf16.msra.mxu0 0
  %118 = vmatprep.subr.bf16.mxu0 0
  %119 = vmatpush1.bf16.msra.mxu0 0
  %120 = vmatprep.subr.bf16.mxu0 0
  %121 = vmatpush1.bf16.msra.mxu0 0
  %122 = vmatprep.subr.bf16.mxu0 0
  %123 = vmatpush1.bf16.msra.mxu0 0
  %124 = vmatprep.subr.bf16.mxu0 0
  %125 = vmatpush1.bf16.msra.mxu0 0
  %126 = vmatprep.mubr.bf16.mxu0 0
  %127 = vmatmul.mubr.bf16.gmra.mrb[0].mxu0 %v22
  %v128 = vpop.f32.mrb[0].mxu0
  %v129 = vadd.f32 %v44, %v128
  %v130 = vpop.f32.mrb[0].mxu0
  %v131 = vpop.f32.mrb[0].mxu0
  %v132 = vpop.f32.mrb[0].mxu0
  %133 = vdwg.mxu0
  %v134 = vmax.f32 %v129, 0.0
  %v135 = vpack.c.bf16 %v134, %v134
  %v136 = vld [vmem:[%s3] sm:$0xf]
  %v137 = vld [vmem:[%s3 + $0x4] sm:$0xf]
  %v138 = vld [vmem:[%s3 + $0x8] sm:$0xf]
  %v139 = vld [vmem:[%s3 + $0xc] sm:$0xf]
  %v140 = vld [vmem:[%s3 + $0x10] sm:$0xf]
  %v141 = vld [vmem:[%s3 + $0x14] sm:$0xf]
  %v142 = vld [vmem:[%s3 + $0x18] sm:$0xf]
  %v143 = vld [vmem:[%s3 + $0x1c] sm:$0xf]
  %v144 = vld [vmem:[%s3 + $0x20] sm:$0xf]
  %v145 = vld [vmem:[%s3 + $0x24] sm:$0xf]
  %v146 = vld [vmem:[%s3 + $0x28] sm:$0xf]
  %v147 = vld [vmem:[%s3 + $0x2c] sm:$0xf]
  %v148 = vld [vmem:[%s3 + $0x30] sm:$0xf]
  %v149 = vld [vmem:[%s3 + $0x34] sm:$0xf]
  %v150 = vld [vmem:[%s3 + $0x38] sm:$0xf]
  %v151 = vld [vmem:[%s3 + $0x3c] sm:$0xf]
  %v152 = vld [vmem:[%s4] sm:$0x1]
  %v154 = vlaneseq
  %v155 = vshrl.u32 %v154, 7
  %v156 = vsub.s32 0, %v155
  %v157 = vrot.slane %v152, %v156
  %v175 = vunpack.c.l.b16 %v136
  %v176 = vunpack.c.l.b16 %v137
  %v177 = vunpack.c.l.b16 %v138
  %v178 = vunpack.c.l.b16 %v139
  %v179 = vunpack.c.l.b16 %v140
  %v180 = vunpack.c.l.b16 %v141
  %v181 = vunpack.c.l.b16 %v142
  %v182 = vunpack.c.l.b16 %v143
  %v183 = vunpack.c.l.b16 %v144
  %v184 = vunpack.c.l.b16 %v145
  %v185 = vunpack.c.l.b16 %v146
  %v186 = vunpack.c.l.b16 %v147
  %v187 = vunpack.c.l.b16 %v148
  %v188 = vunpack.c.l.b16 %v149
  %v189 = vunpack.c.l.b16 %v150
  %v190 = vunpack.c.l.b16 %v151
  %v191 = vpack.c.b16 %v176, %v175
  %v192 = vpack.c.b16 %v178, %v177
  %v193 = vpack.c.b16 %v180, %v179
  %v194 = vpack.c.b16 %v182, %v181
  %v195 = vpack.c.b16 %v184, %v183
  %v196 = vpack.c.b16 %v186, %v185
  %v197 = vpack.c.b16 %v188, %v187
  %v198 = vpack.c.b16 %v190, %v189
  %207 = vmatprep.subr.bf16.mxu0 0
  %208 = vmatpush1.bf16.msra.mxu0 %v191
  %209 = vmatprep.subr.bf16.mxu0 0
  %210 = vmatpush1.bf16.msra.mxu0 %v192
  %211 = vmatprep.subr.bf16.mxu0 0
  %212 = vmatpush1.bf16.msra.mxu0 %v193
  %213 = vmatprep.subr.bf16.mxu0 0
  %214 = vmatpush1.bf16.msra.mxu0 %v194
  %215 = vmatprep.subr.bf16.mxu0 0
  %216 = vmatpush1.bf16.msra.mxu0 %v195
  %217 = vmatprep.subr.bf16.mxu0 0
  %218 = vmatpush1.bf16.msra.mxu0 %v196
  %219 = vmatprep.subr.bf16.mxu0 0
  %220 = vmatpush1.bf16.msra.mxu0 %v197
  %221 = vmatprep.subr.bf16.mxu0 0
  %222 = vmatpush1.bf16.msra.mxu0 %v198
  %223 = vmatprep.subr.bf16.mxu0 0
  %224 = vmatpush1.bf16.msra.mxu0 0
  %225 = vmatprep.subr.bf16.mxu0 0
  %226 = vmatpush1.bf16.msra.mxu0 0
  %227 = vmatprep.subr.bf16.mxu0 0
  %228 = vmatpush1.bf16.msra.mxu0 0
  %229 = vmatprep.subr.bf16.mxu0 0
  %230 = vmatpush1.bf16.msra.mxu0 0
  %231 = vmatprep.subr.bf16.mxu0 0
  %232 = vmatpush1.bf16.msra.mxu0 0
  %233 = vmatprep.subr.bf16.mxu0 0
  %234 = vmatpush1.bf16.msra.mxu0 0
  %235 = vmatprep.subr.bf16.mxu0 0
  %236 = vmatpush1.bf16.msra.mxu0 0
  %237 = vmatprep.subr.bf16.mxu0 0
  %238 = vmatpush1.bf16.msra.mxu0 0
  %239 = vmatprep.mubr.bf16.mxu0 0
  %240 = vmatmul.mubr.bf16.gmra.mrb[0].mxu0 %v135
  %v241 = vpop.f32.mrb[0].mxu0
  %v242 = vadd.f32 %v157, %v241
  %v243 = vpop.f32.mrb[0].mxu0
  %v244 = vpop.f32.mrb[0].mxu0
  %v245 = vpop.f32.mrb[0].mxu0
  %246 = vdwg.mxu0
  %v247 = vsub.f32 0.0, %v242
  %v248 = vmul.f32 %v247, 1.442695
  %v249 = vpow.pop %v248
  %v250 = vadd.f32 %v249, 1.0
  %v251 = vrcp.pop %v250
  %v252 = vmul.f32 1.0, %v251
  %253 = vst [vmem:[%s5] sm:$0x3] %v252
  // Predicated region
  $region22: #{distilbert_class_forward.11} parent=0 // pred_check
    _
  $region23: #{distilbert_class_forward.11} parent=0 // pred_check_branch
    %255 = sbr.rel (0) target = $region25
  $region24: #{distilbert_class_forward.11} parent=0 // pred_region
    _
  $region25: #{distilbert_class_forward.11} parent=0 // pred_fallthru
    _
  // Predicated region
  $region26: #{distilbert_class_forward.11} parent=0 // pred_check
    _
  $region27: #{distilbert_class_forward.11} parent=0 // pred_check_branch
    %257 = sbr.rel (0) target = $region29
  $region28: #{distilbert_class_forward.11} parent=0 // pred_region
    _
  $region29: #{distilbert_class_forward.11} parent=0 // pred_fallthru
    _

// kernel: distilbert_class_forward.8
$region0: #{distilbert_class_forward.8}
  #allocation0 [shape = 'u32[]', space=smem, size = 0x4, offset = 0x4, fixed_abs, tag = 'smem constant byte address 0x4 - core index']
  #allocation1 [shape = 'u32[144,128]{1,0:T(1,128)}', space=vmem, size = 0x12000, scoped, tag = 'internal scratch']
  %s0 = inlined_call_operand.vmem [shape: f32[16,128], index: 0, kind: input, shape index: {}]
  %s1 = inlined_call_operand.vmem [shape: bf16[128,256], index: 1, kind: input, shape index: {}]
  %s2 = inlined_call_operand.vmem [shape: f32[1,256], index: 2, kind: input, shape index: {}]
  %s3 = inlined_call_operand.vmem [shape: bf16[256,128], index: 3, kind: input, shape index: {}]
  %s4 = inlined_call_operand.vmem [shape: f32[1,128], index: 4, kind: input, shape index: {}]
  %s5 = inlined_call_operand.vmem [shape: f32[1,128], index: 5, kind: input, shape index: {}]
  %s6 = inlined_call_operand.vmem [shape: f32[1,128], index: 6, kind: input, shape index: {}]
  %s7 = inlined_call_operand.vmem [shape: f32[16,128], index: 7, kind: output, shape index: {}]
  %s8 = sld [smem:[#allocation0]]
  $region38: #{distilbert_class_forward.8} parent=0
    _
  %s10 = ssub.s32 1, %s8
  %s11 = scalar_select 0, %s10, %s8
  // Predicated region
  $region2: #{distilbert_class_forward.8} parent=0 // pred_check
    _
  $region3: #{distilbert_class_forward.8} parent=0 // pred_check_branch
    %13 = sbr.rel (0) target = $region5
  $region4: #{distilbert_class_forward.8} parent=0 // pred_region
    _
  $region5: #{distilbert_class_forward.8} parent=0 // pred_fallthru
    _
  // Predicated region
  $region6: #{distilbert_class_forward.8} parent=0 // pred_check
    _
  $region7: #{distilbert_class_forward.8} parent=0 // pred_check_branch
    %15 = sbr.rel (0) target = $region9
  $region8: #{distilbert_class_forward.8} parent=0 // pred_region
    _
  $region9: #{distilbert_class_forward.8} parent=0 // pred_fallthru
    _
  // Predicated region
  $region10: #{distilbert_class_forward.8} parent=0 // pred_check
    _
  $region11: #{distilbert_class_forward.8} parent=0 // pred_check_branch
    %17 = sbr.rel (0) target = $region13
  $region12: #{distilbert_class_forward.8} parent=0 // pred_region
    _
  $region13: #{distilbert_class_forward.8} parent=0 // pred_fallthru
    _
  // Predicated region
  $region14: #{distilbert_class_forward.8} parent=0 // pred_check
    _
  $region15: #{distilbert_class_forward.8} parent=0 // pred_check_branch
    %19 = sbr.rel (0) target = $region17
  $region16: #{distilbert_class_forward.8} parent=0 // pred_region
    _
  $region17: #{distilbert_class_forward.8} parent=0 // pred_fallthru
    _
  // Predicated region
  $region18: #{distilbert_class_forward.8} parent=0 // pred_check
    _
  $region19: #{distilbert_class_forward.8} parent=0 // pred_check_branch
    %21 = sbr.rel (0) target = $region21
  $region20: #{distilbert_class_forward.8} parent=0 // pred_region
    _
  $region21: #{distilbert_class_forward.8} parent=0 // pred_fallthru
    _
  // Predicated region
  $region22: #{distilbert_class_forward.8} parent=0 // pred_check
    _
  $region23: #{distilbert_class_forward.8} parent=0 // pred_check_branch
    %23 = sbr.rel (0) target = $region25
  $region24: #{distilbert_class_forward.8} parent=0 // pred_region
    _
  $region25: #{distilbert_class_forward.8} parent=0 // pred_fallthru
    _
  // Predicated region
  $region26: #{distilbert_class_forward.8} parent=0 // pred_check
    _
  $region27: #{distilbert_class_forward.8} parent=0 // pred_check_branch
    %25 = sbr.rel (0) target = $region29
  $region28: #{distilbert_class_forward.8} parent=0 // pred_region
    _
  $region29: #{distilbert_class_forward.8} parent=0 // pred_fallthru
    _
  %v27 = vld [vmem:[%s0] sm:$0xff]
  %v28 = vld [vmem:[%s0 + $0x8] sm:$0xff]
  %v29 = vpack.c.bf16 %v28, %v27
  %v30 = vld [vmem:[%s1] sm:$0xff]
  %v31 = vld [vmem:[%s1 + $0x8] sm:$0xff]
  %v32 = vld [vmem:[%s1 + $0x10] sm:$0xff]
  %v33 = vld [vmem:[%s1 + $0x18] sm:$0xff]
  %v34 = vld [vmem:[%s1 + $0x20] sm:$0xff]
  %v35 = vld [vmem:[%s1 + $0x28] sm:$0xff]
  %v36 = vld [vmem:[%s1 + $0x30] sm:$0xff]
  %v37 = vld [vmem:[%s1 + $0x38] sm:$0xff]
  %v38 = vld [vmem:[%s1 + $0x40] sm:$0xff]
  %v39 = vld [vmem:[%s1 + $0x48] sm:$0xff]
  %v40 = vld [vmem:[%s1 + $0x50] sm:$0xff]
  %v41 = vld [vmem:[%s1 + $0x58] sm:$0xff]
  %v42 = vld [vmem:[%s1 + $0x60] sm:$0xff]
  %v43 = vld [vmem:[%s1 + $0x68] sm:$0xff]
  %v44 = vld [vmem:[%s1 + $0x70] sm:$0xff]
  %v45 = vld [vmem:[%s1 + $0x78] sm:$0xff]
  %v46 = vld [vmem:[%s2] sm:$0x3]
  %v48 = vlaneseq
  %v49 = vshrl.u32 %v48, 7
  %v50 = vsub.s32 0, %v49
  %v51 = vrot.slane %v46, %v50
  %v52 = vlaneseq
  %v53 = vshrl.u32 %v52, 7
  %v54 = vsub.s32 1, %v53
  %v55 = vrot.slane %v46, %v54
  %v74 = vunpack.c.l.b16 %v30
  %v75 = vunpack.c.h.b16 %v30
  %v76 = vunpack.c.l.b16 %v31
  %v77 = vunpack.c.h.b16 %v31
  %v78 = vunpack.c.l.b16 %v32
  %v79 = vunpack.c.h.b16 %v32
  %v80 = vunpack.c.l.b16 %v33
  %v81 = vunpack.c.h.b16 %v33
  %v82 = vunpack.c.l.b16 %v34
  %v83 = vunpack.c.h.b16 %v34
  %v84 = vunpack.c.l.b16 %v35
  %v85 = vunpack.c.h.b16 %v35
  %v86 = vunpack.c.l.b16 %v36
  %v87 = vunpack.c.h.b16 %v36
  %v88 = vunpack.c.l.b16 %v37
  %v89 = vunpack.c.h.b16 %v37
  %v90 = vunpack.c.l.b16 %v38
  %v91 = vunpack.c.h.b16 %v38
  %v92 = vunpack.c.l.b16 %v39
  %v93 = vunpack.c.h.b16 %v39
  %v94 = vunpack.c.l.b16 %v40
  %v95 = vunpack.c.h.b16 %v40
  %v96 = vunpack.c.l.b16 %v41
  %v97 = vunpack.c.h.b16 %v41
  %v98 = vunpack.c.l.b16 %v42
  %v99 = vunpack.c.h.b16 %v42
  %v100 = vunpack.c.l.b16 %v43
  %v101 = vunpack.c.h.b16 %v43
  %v102 = vunpack.c.l.b16 %v44
  %v103 = vunpack.c.h.b16 %v44
  %v104 = vunpack.c.l.b16 %v45
  %v105 = vunpack.c.h.b16 %v45
  %v106 = vpack.c.b16 %v76, %v74
  %v107 = vpack.c.b16 %v77, %v75
  %v108 = vpack.c.b16 %v80, %v78
  %v109 = vpack.c.b16 %v81, %v79
  %v110 = vpack.c.b16 %v84, %v82
  %v111 = vpack.c.b16 %v85, %v83
  %v112 = vpack.c.b16 %v88, %v86
  %v113 = vpack.c.b16 %v89, %v87
  %v114 = vpack.c.b16 %v92, %v90
  %v115 = vpack.c.b16 %v93, %v91
  %v116 = vpack.c.b16 %v96, %v94
  %v117 = vpack.c.b16 %v97, %v95
  %v118 = vpack.c.b16 %v100, %v98
  %v119 = vpack.c.b16 %v101, %v99
  %v120 = vpack.c.b16 %v104, %v102
  %v121 = vpack.c.b16 %v105, %v103
  %138 = vmatprep.subr.bf16.mxu0 %v107
  %139 = vmatpush1.bf16.msra.mxu0 %v106
  %140 = vmatprep.subr.bf16.mxu0 %v109
  %141 = vmatpush1.bf16.msra.mxu0 %v108
  %142 = vmatprep.subr.bf16.mxu0 %v111
  %143 = vmatpush1.bf16.msra.mxu0 %v110
  %144 = vmatprep.subr.bf16.mxu0 %v113
  %145 = vmatpush1.bf16.msra.mxu0 %v112
  %146 = vmatprep.subr.bf16.mxu0 %v115
  %147 = vmatpush1.bf16.msra.mxu0 %v114
  %148 = vmatprep.subr.bf16.mxu0 %v117
  %149 = vmatpush1.bf16.msra.mxu0 %v116
  %150 = vmatprep.subr.bf16.mxu0 %v119
  %151 = vmatpush1.bf16.msra.mxu0 %v118
  %152 = vmatprep.subr.bf16.mxu0 %v121
  %153 = vmatpush1.bf16.msra.mxu0 %v120
  %154 = vmatprep.subr.bf16.mxu0 0
  %155 = vmatpush1.bf16.msra.mxu0 0
  %156 = vmatprep.subr.bf16.mxu0 0
  %157 = vmatpush1.bf16.msra.mxu0 0
  %158 = vmatprep.subr.bf16.mxu0 0
  %159 = vmatpush1.bf16.msra.mxu0 0
  %160 = vmatprep.subr.bf16.mxu0 0
  %161 = vmatpush1.bf16.msra.mxu0 0
  %162 = vmatprep.subr.bf16.mxu0 0
  %163 = vmatpush1.bf16.msra.mxu0 0
  %164 = vmatprep.subr.bf16.mxu0 0
  %165 = vmatpush1.bf16.msra.mxu0 0
  %166 = vmatprep.subr.bf16.mxu0 0
  %167 = vmatpush1.bf16.msra.mxu0 0
  %168 = vmatprep.subr.bf16.mxu0 0
  %169 = vmatpush1.bf16.msra.mxu0 0
  %170 = vmatprep.mubr.bf16.mxu0 0
  %171 = vmatmul.mubr.bf16.gmra.mrb[0].mxu0 %v29
  %v172 = vpop.f32.mrb[0].mxu0
  %v173 = vadd.f32 %v51, %v172
  %v174 = vpop.f32.mrb[0].mxu0
  %v175 = vadd.f32 %v55, %v174
  %v176 = vpop.f32.mrb[0].mxu0
  %v177 = vadd.f32 %v51, %v176
  %v178 = vpop.f32.mrb[0].mxu0
  %v179 = vadd.f32 %v55, %v178
  %180 = vdwg.mxu0
  %v181 = vmul.f32 %v173, 0.5
  %v182 = vmul.f32 %v175, 0.5
  %v183 = vmul.f32 %v177, 0.5
  %v184 = vmul.f32 %v179, 0.5
  %v185 = vmul.f32 %v173, 0.044715
  %v186 = vmul.f32 %v175, 0.044715
  %v187 = vmul.f32 %v177, 0.044715
  %v188 = vmul.f32 %v179, 0.044715
  %v189 = vmul.f32 %v185, %v173
  %v190 = vmul.f32 %v186, %v175
  %v191 = vmul.f32 %v187, %v177
  %v192 = vmul.f32 %v188, %v179
  %v193 = vmul.f32 %v189, %v173
  %v194 = vmul.f32 %v190, %v175
  %v195 = vmul.f32 %v191, %v177
  %v196 = vmul.f32 %v192, %v179
  %v197 = vadd.f32 %v173, %v193
  %v198 = vadd.f32 %v175, %v194
  %v199 = vadd.f32 %v177, %v195
  %v200 = vadd.f32 %v179, %v196
  %v201 = vmul.f32 %v197, 0.7978846
  %v202 = vmul.f32 %v198, 0.7978846
  %v203 = vmul.f32 %v199, 0.7978846
  %v204 = vmul.f32 %v200, 0.7978846
  %v205 = vtanh.pop %v201
  %v206 = vtanh.pop %v202
  %v207 = vtanh.pop %v203
  %v208 = vtanh.pop %v204
  %v209 = vadd.f32 %v205, 1.0
  %v210 = vadd.f32 %v206, 1.0
  %v211 = vadd.f32 %v207, 1.0
  %v212 = vadd.f32 %v208, 1.0
  %v213 = vmul.f32 %v181, %v209
  %v214 = vmul.f32 %v182, %v210
  %v215 = vmul.f32 %v183, %v211
  %v216 = vmul.f32 %v184, %v212
  %v217 = vpack.c.bf16 %v215, %v213
  %v218 = vpack.c.bf16 %v216, %v214
  %v219 = vld [vmem:[%s3] sm:$0xf]
  %v220 = vld [vmem:[%s3 + $0x4] sm:$0xf]
  %v221 = vld [vmem:[%s3 + $0x8] sm:$0xf]
  %v222 = vld [vmem:[%s3 + $0xc] sm:$0xf]
  %v223 = vld [vmem:[%s3 + $0x10] sm:$0xf]
  %v224 = vld [vmem:[%s3 + $0x14] sm:$0xf]
  %v225 = vld [vmem:[%s3 + $0x18] sm:$0xf]
  %v226 = vld [vmem:[%s3 + $0x1c] sm:$0xf]
  %v227 = vld [vmem:[%s3 + $0x20] sm:$0xf]
  %v228 = vld [vmem:[%s3 + $0x24] sm:$0xf]
  %v229 = vld [vmem:[%s3 + $0x28] sm:$0xf]
  %v230 = vld [vmem:[%s3 + $0x2c] sm:$0xf]
  %v231 = vld [vmem:[%s3 + $0x30] sm:$0xf]
  %v232 = vld [vmem:[%s3 + $0x34] sm:$0xf]
  %v233 = vld [vmem:[%s3 + $0x38] sm:$0xf]
  %v234 = vld [vmem:[%s3 + $0x3c] sm:$0xf]
  %v235 = vld [vmem:[%s3 + $0x40] sm:$0xf]
  %v236 = vld [vmem:[%s3 + $0x44] sm:$0xf]
  %v237 = vld [vmem:[%s3 + $0x48] sm:$0xf]
  %v238 = vld [vmem:[%s3 + $0x4c] sm:$0xf]
  %v239 = vld [vmem:[%s3 + $0x50] sm:$0xf]
  %v240 = vld [vmem:[%s3 + $0x54] sm:$0xf]
  %v241 = vld [vmem:[%s3 + $0x58] sm:$0xf]
  %v242 = vld [vmem:[%s3 + $0x5c] sm:$0xf]
  %v243 = vld [vmem:[%s3 + $0x60] sm:$0xf]
  %v244 = vld [vmem:[%s3 + $0x64] sm:$0xf]
  %v245 = vld [vmem:[%s3 + $0x68] sm:$0xf]
  %v246 = vld [vmem:[%s3 + $0x6c] sm:$0xf]
  %v247 = vld [vmem:[%s3 + $0x70] sm:$0xf]
  %v248 = vld [vmem:[%s3 + $0x74] sm:$0xf]
  %v249 = vld [vmem:[%s3 + $0x78] sm:$0xf]
  %v250 = vld [vmem:[%s3 + $0x7c] sm:$0xf]
  %v251 = vld [vmem:[%s4] sm:$0x1]
  %v253 = vlaneseq
  %v254 = vshrl.u32 %v253, 7
  %v255 = vsub.s32 0, %v254
  %v256 = vrot.slane %v251, %v255
  %v290 = vunpack.c.l.b16 %v219
  %v291 = vunpack.c.l.b16 %v220
  %v292 = vunpack.c.l.b16 %v221
  %v293 = vunpack.c.l.b16 %v222
  %v294 = vunpack.c.l.b16 %v223
  %v295 = vunpack.c.l.b16 %v224
  %v296 = vunpack.c.l.b16 %v225
  %v297 = vunpack.c.l.b16 %v226
  %v298 = vunpack.c.l.b16 %v227
  %v299 = vunpack.c.l.b16 %v228
  %v300 = vunpack.c.l.b16 %v229
  %v301 = vunpack.c.l.b16 %v230
  %v302 = vunpack.c.l.b16 %v231
  %v303 = vunpack.c.l.b16 %v232
  %v304 = vunpack.c.l.b16 %v233
  %v305 = vunpack.c.l.b16 %v234
  %v306 = vunpack.c.l.b16 %v235
  %v307 = vunpack.c.l.b16 %v236
  %v308 = vunpack.c.l.b16 %v237
  %v309 = vunpack.c.l.b16 %v238
  %v310 = vunpack.c.l.b16 %v239
  %v311 = vunpack.c.l.b16 %v240
  %v312 = vunpack.c.l.b16 %v241
  %v313 = vunpack.c.l.b16 %v242
  %v314 = vunpack.c.l.b16 %v243
  %v315 = vunpack.c.l.b16 %v244
  %v316 = vunpack.c.l.b16 %v245
  %v317 = vunpack.c.l.b16 %v246
  %v318 = vunpack.c.l.b16 %v247
  %v319 = vunpack.c.l.b16 %v248
  %v320 = vunpack.c.l.b16 %v249
  %v321 = vunpack.c.l.b16 %v250
  %v322 = vpack.c.b16 %v291, %v290
  %v323 = vpack.c.b16 %v293, %v292
  %v324 = vpack.c.b16 %v295, %v294
  %v325 = vpack.c.b16 %v297, %v296
  %v326 = vpack.c.b16 %v299, %v298
  %v327 = vpack.c.b16 %v301, %v300
  %v328 = vpack.c.b16 %v303, %v302
  %v329 = vpack.c.b16 %v305, %v304
  %v330 = vpack.c.b16 %v307, %v306
  %v331 = vpack.c.b16 %v309, %v308
  %v332 = vpack.c.b16 %v311, %v310
  %v333 = vpack.c.b16 %v313, %v312
  %v334 = vpack.c.b16 %v315, %v314
  %v335 = vpack.c.b16 %v317, %v316
  %v336 = vpack.c.b16 %v319, %v318
  %v337 = vpack.c.b16 %v321, %v320
  %354 = vmatprep.subr.bf16.mxu0 0
  %355 = vmatpush1.bf16.msra.mxu0 %v322
  %356 = vmatprep.subr.bf16.mxu0 0
  %357 = vmatpush1.bf16.msra.mxu0 %v323
  %358 = vmatprep.subr.bf16.mxu0 0
  %359 = vmatpush1.bf16.msra.mxu0 %v324
  %360 = vmatprep.subr.bf16.mxu0 0
  %361 = vmatpush1.bf16.msra.mxu0 %v325
  %362 = vmatprep.subr.bf16.mxu0 0
  %363 = vmatpush1.bf16.msra.mxu0 %v326
  %364 = vmatprep.subr.bf16.mxu0 0
  %365 = vmatpush1.bf16.msra.mxu0 %v327
  %366 = vmatprep.subr.bf16.mxu0 0
  %367 = vmatpush1.bf16.msra.mxu0 %v328
  %368 = vmatprep.subr.bf16.mxu0 0
  %369 = vmatpush1.bf16.msra.mxu0 %v329
  %370 = vmatprep.subr.bf16.mxu0 0
  %371 = vmatpush1.bf16.msra.mxu0 %v330
  %372 = vmatprep.subr.bf16.mxu0 0
  %373 = vmatpush1.bf16.msra.mxu0 %v331
  %374 = vmatprep.subr.bf16.mxu0 0
  %375 = vmatpush1.bf16.msra.mxu0 %v332
  %376 = vmatprep.subr.bf16.mxu0 0
  %377 = vmatpush1.bf16.msra.mxu0 %v333
  %378 = vmatprep.subr.bf16.mxu0 0
  %379 = vmatpush1.bf16.msra.mxu0 %v334
  %380 = vmatprep.subr.bf16.mxu0 0
  %381 = vmatpush1.bf16.msra.mxu0 %v335
  %382 = vmatprep.subr.bf16.mxu0 0
  %383 = vmatpush1.bf16.msra.mxu0 %v336
  %384 = vmatprep.subr.bf16.mxu0 0
  %385 = vmatpush1.bf16.msra.mxu0 %v337
  %386 = vmatprep.mubr.bf16.mxu0 %v218
  %387 = vmatmul.mubr.bf16.gmra.mrb[0].mxu0 %v217
  %v388 = vpop.f32.mrb[0].mxu0
  %v389 = vadd.f32 %v256, %v388
  %v390 = vpop.f32.mrb[0].mxu0
  %v391 = vpop.f32.mrb[0].mxu0
  %v392 = vadd.f32 %v256, %v391
  %v393 = vpop.f32.mrb[0].mxu0
  %394 = vdwg.mxu0
  %v395 = vadd.f32 %v27, %v389
  %v396 = vadd.f32 %v28, %v392
  %397 = vadd.xlane.f32.xlu0 %v395
  %v398 = vpop.xlane.xlu0 %397
  %399 = vadd.xlane.f32.xlu0 %v396
  %v400 = vpop.xlane.xlu0 %399
  %v401 = vrcp.pop 128.0
  %v402 = vmul.f32 %v398, %v401
  %v403 = vmul.f32 %v400, %v401
  %v404 = vsub.f32 %v395, %v402
  %v405 = vsub.f32 %v396, %v403
  %v406 = vmul.f32 %v404, %v404
  %v407 = vmul.f32 %v405, %v405
  %408 = vadd.xlane.f32.xlu0 %v406
  %v409 = vpop.xlane.xlu0 %408
  %410 = vadd.xlane.f32.xlu0 %v407
  %v411 = vpop.xlane.xlu0 %410
  %v412 = vmul.f32 %v409, %v401
  %v413 = vmul.f32 %v411, %v401
  %v414 = vadd.f32 %v412, 1e-12
  %v415 = vadd.f32 %v413, 1e-12
  %v416 = vrsqrt.pop %v414
  %v417 = vrsqrt.pop %v415
  %v418 = vmul.f32 %v404, %v416
  %v419 = vmul.f32 %v405, %v417
  %v420 = vld [vmem:[%s5] sm:$0x1]
  %v422 = vlaneseq
  %v423 = vshrl.u32 %v422, 7
  %v424 = vsub.s32 0, %v423
  %v425 = vrot.slane %v420, %v424
  %v427 = vmul.f32 %v418, %v425
  %v428 = vmul.f32 %v419, %v425
  %v429 = vld [vmem:[%s6] sm:$0x1]
  %v431 = vlaneseq
  %v432 = vshrl.u32 %v431, 7
  %v433 = vsub.s32 0, %v432
  %v434 = vrot.slane %v429, %v433
  %v436 = vadd.f32 %v427, %v434
  %v437 = vadd.f32 %v428, %v434
  %438 = vst [vmem:[%s7] sm:$0xff] %v436
  %439 = vst [vmem:[%s7 + $0x8] sm:$0xff] %v437
  // Predicated region
  $region30: #{distilbert_class_forward.8} parent=0 // pred_check
    _
  $region31: #{distilbert_class_forward.8} parent=0 // pred_check_branch
    %441 = sbr.rel (0) target = $region33
  $region32: #{distilbert_class_forward.8} parent=0 // pred_region
    _
  $region33: #{distilbert_class_forward.8} parent=0 // pred_fallthru
    _
  // Predicated region
  $region34: #{distilbert_class_forward.8} parent=0 // pred_check
    _
  $region35: #{distilbert_class_forward.8} parent=0 // pred_check_branch
    %443 = sbr.rel (0) target = $region37
  $region36: #{distilbert_class_forward.8} parent=0 // pred_region
    _
  $region37: #{distilbert_class_forward.8} parent=0 // pred_fallthru
    _

// kernel: distilbert_class_forward.7
$region0: #{distilbert_class_forward.7}
  #allocation0 [shape = 'u32[]', space=smem, size = 0x4, offset = 0x4, fixed_abs, tag = 'smem constant byte address 0x4 - core index']
  #allocation1 [shape = 'u32[144,128]{1,0:T(1,128)}', space=vmem, size = 0x12000, scoped, tag = 'internal scratch']
  %s0 = inlined_call_operand.vmem [shape: f32[2,8,128], index: 0, kind: input, shape index: {}]
  %s1 = inlined_call_operand.vmem [shape: f32[2,1,8], index: 1, kind: input, shape index: {}]
  %s2 = inlined_call_operand.vmem [shape: bf16[128,384], index: 2, kind: input, shape index: {}]
  %s3 = inlined_call_operand.vmem [shape: f32[1,384], index: 3, kind: input, shape index: {}]
  %s4 = inlined_call_operand.vmem [shape: bf16[128,128], index: 4, kind: input, shape index: {}]
  %s5 = inlined_call_operand.vmem [shape: f32[1,128], index: 5, kind: input, shape index: {}]
  %s6 = inlined_call_operand.vmem [shape: f32[1,128], index: 6, kind: input, shape index: {}]
  %s7 = inlined_call_operand.vmem [shape: f32[1,128], index: 7, kind: input, shape index: {}]
  %s8 = inlined_call_operand.vmem [shape: f32[2,8,128], index: 8, kind: output, shape index: {}]
  %s9 = sld [smem:[#allocation0]]
  $region65: #{distilbert_class_forward.7} parent=0
    _
  %s11 = ssub.s32 1, %s9
  %s12 = scalar_select 0, %s11, %s9
  loop: start=0, step=1, limit=4
  $region2: #{distilbert_class_forward.7} parent=0 // loop_pre_header
    _
  $region3: #{distilbert_class_forward.7} parent=0 // loop_header
    %s14 = sphi 0, %s18
    %p15 = scmp.ge.s32.totalorder %s14, 4
    %s24 = sphi 0, %s26
    %s27 = sphi 0, %s24
    %s28 = sphi 0, %s27
    %s44 = sphi 0, %s28
    %s50 = sphi 0, %s52
    %s53 = sphi 0, %s50
    %s54 = sphi 0, %s53
    %s70 = sphi 0, %s54
    %s74 = sphi 0, %s74
    %s76 = sphi 0, %s74
    %s77 = sphi 0, %s76
    %s91 = sphi 0, %s77
    %s95 = sphi 0, %s95
    %s97 = sphi 0, %s95
    %s98 = sphi 0, %s97
    %s112 = sphi 0, %s98
    %s116 = sphi 0, %s116
    %s118 = sphi 0, %s116
    %s119 = sphi 0, %s118
    %s133 = sphi 0, %s119
    %s137 = sphi 0, %s137
    %s139 = sphi 0, %s137
    %s140 = sphi 0, %s139
    %s154 = sphi 0, %s140
    %s158 = sphi 0, %s158
    %s160 = sphi 0, %s158
    %s161 = sphi 0, %s160
    %s175 = sphi 0, %s161
    %s179 = sphi 0, %s179
    %s181 = sphi 0, %s179
    %s182 = sphi 0, %s181
    %s196 = sphi 0, %s182
    %s202 = sphi 0, %s204
    %s205 = sphi 0, %s202
    %s206 = sphi 0, %s205
    %s222 = sphi 0, %s206
  $region4: #{distilbert_class_forward.7} parent=0 // loop_header_branch
    %17 = sbr.rel (%p15) target = $region8
  $region5: #{distilbert_class_forward.7} parent=0 // loop_body
    %s19 = ssub.s32 %s14, 1
    %s20 = ssub.s32 %s14, 2
    %s21 = sadd.s32 %s14, 1
    %s22 = ssub.s32 %s14, %s21
    %p23 = scmp.eq.s32.totalorder %s22, 0
    %s25 = sadd.s32 %s24, 1
    %s26 = scalar_select %p23, %s24, %s25
    %p29 = pneg %p23
    %p30 = scmp.eq.s32.totalorder %s14, 1
    %p31 = por %p29, %p30
    %p32 = scmp.ne.s32.totalorder %s24, %s27
    %p33 = scmp.eq.s32.totalorder %s14, 0
    %p34 = por %p32, %p33
    %p35 = scmp.ne.s32.totalorder %s24, %s27
    %p36 = scmp.eq.s32.totalorder %s19, 1
    %p37 = por %p35, %p36
    %p38 = scmp.ne.s32.totalorder %s27, %s28
    %p39 = scmp.eq.s32.totalorder %s19, 0
    %p40 = por %p38, %p39
    %p41 = scmp.ne.s32.totalorder %s27, %s28
    %p42 = scmp.eq.s32.totalorder %s20, 1
    %p43 = por %p41, %p42
    %p45 = scmp.ne.s32.totalorder %s28, %s44
    %p46 = scmp.eq.s32.totalorder %s20, 0
    %p47 = por %p45, %p46
    %s48 = ssub.s32 %s14, %s21
    %p49 = scmp.eq.s32.totalorder %s48, 0
    %s51 = sadd.s32 %s50, 1
    %s52 = scalar_select %p49, %s50, %s51
    %p55 = pneg %p49
    %p56 = scmp.eq.s32.totalorder %s14, 1
    %p57 = por %p55, %p56
    %p58 = scmp.ne.s32.totalorder %s50, %s53
    %p59 = scmp.eq.s32.totalorder %s14, 0
    %p60 = por %p58, %p59
    %p61 = scmp.ne.s32.totalorder %s50, %s53
    %p62 = scmp.eq.s32.totalorder %s19, 1
    %p63 = por %p61, %p62
    %p64 = scmp.ne.s32.totalorder %s53, %s54
    %p65 = scmp.eq.s32.totalorder %s19, 0
    %p66 = por %p64, %p65
    %p67 = scmp.ne.s32.totalorder %s53, %s54
    %p68 = scmp.eq.s32.totalorder %s20, 1
    %p69 = por %p67, %p68
    %p71 = scmp.ne.s32.totalorder %s54, %s70
    %p72 = scmp.eq.s32.totalorder %s20, 0
    %p73 = por %p71, %p72
    %s75 = sadd.s32 %s74, 1
    %p78 = scmp.eq.s32.totalorder %s14, 1
    %p79 = scmp.ne.s32.totalorder %s74, %s76
    %p80 = scmp.eq.s32.totalorder %s14, 0
    %p81 = por %p79, %p80
    %p82 = scmp.ne.s32.totalorder %s74, %s76
    %p83 = scmp.eq.s32.totalorder %s19, 1
    %p84 = por %p82, %p83
    %p85 = scmp.ne.s32.totalorder %s76, %s77
    %p86 = scmp.eq.s32.totalorder %s19, 0
    %p87 = por %p85, %p86
    %p88 = scmp.ne.s32.totalorder %s76, %s77
    %p89 = scmp.eq.s32.totalorder %s20, 1
    %p90 = por %p88, %p89
    %p92 = scmp.ne.s32.totalorder %s77, %s91
    %p93 = scmp.eq.s32.totalorder %s20, 0
    %p94 = por %p92, %p93
    %s96 = sadd.s32 %s95, 1
    %p99 = scmp.eq.s32.totalorder %s14, 1
    %p100 = scmp.ne.s32.totalorder %s95, %s97
    %p101 = scmp.eq.s32.totalorder %s14, 0
    %p102 = por %p100, %p101
    %p103 = scmp.ne.s32.totalorder %s95, %s97
    %p104 = scmp.eq.s32.totalorder %s19, 1
    %p105 = por %p103, %p104
    %p106 = scmp.ne.s32.totalorder %s97, %s98
    %p107 = scmp.eq.s32.totalorder %s19, 0
    %p108 = por %p106, %p107
    %p109 = scmp.ne.s32.totalorder %s97, %s98
    %p110 = scmp.eq.s32.totalorder %s20, 1
    %p111 = por %p109, %p110
    %p113 = scmp.ne.s32.totalorder %s98, %s112
    %p114 = scmp.eq.s32.totalorder %s20, 0
    %p115 = por %p113, %p114
    %s117 = sadd.s32 %s116, 1
    %p120 = scmp.eq.s32.totalorder %s14, 1
    %p121 = scmp.ne.s32.totalorder %s116, %s118
    %p122 = scmp.eq.s32.totalorder %s14, 0
    %p123 = por %p121, %p122
    %p124 = scmp.ne.s32.totalorder %s116, %s118
    %p125 = scmp.eq.s32.totalorder %s19, 1
    %p126 = por %p124, %p125
    %p127 = scmp.ne.s32.totalorder %s118, %s119
    %p128 = scmp.eq.s32.totalorder %s19, 0
    %p129 = por %p127, %p128
    %p130 = scmp.ne.s32.totalorder %s118, %s119
    %p131 = scmp.eq.s32.totalorder %s20, 1
    %p132 = por %p130, %p131
    %p134 = scmp.ne.s32.totalorder %s119, %s133
    %p135 = scmp.eq.s32.totalorder %s20, 0
    %p136 = por %p134, %p135
    %s138 = sadd.s32 %s137, 1
    %p141 = scmp.eq.s32.totalorder %s14, 1
    %p142 = scmp.ne.s32.totalorder %s137, %s139
    %p143 = scmp.eq.s32.totalorder %s14, 0
    %p144 = por %p142, %p143
    %p145 = scmp.ne.s32.totalorder %s137, %s139
    %p146 = scmp.eq.s32.totalorder %s19, 1
    %p147 = por %p145, %p146
    %p148 = scmp.ne.s32.totalorder %s139, %s140
    %p149 = scmp.eq.s32.totalorder %s19, 0
    %p150 = por %p148, %p149
    %p151 = scmp.ne.s32.totalorder %s139, %s140
    %p152 = scmp.eq.s32.totalorder %s20, 1
    %p153 = por %p151, %p152
    %p155 = scmp.ne.s32.totalorder %s140, %s154
    %p156 = scmp.eq.s32.totalorder %s20, 0
    %p157 = por %p155, %p156
    %s159 = sadd.s32 %s158, 1
    %p162 = scmp.eq.s32.totalorder %s14, 1
    %p163 = scmp.ne.s32.totalorder %s158, %s160
    %p164 = scmp.eq.s32.totalorder %s14, 0
    %p165 = por %p163, %p164
    %p166 = scmp.ne.s32.totalorder %s158, %s160
    %p167 = scmp.eq.s32.totalorder %s19, 1
    %p168 = por %p166, %p167
    %p169 = scmp.ne.s32.totalorder %s160, %s161
    %p170 = scmp.eq.s32.totalorder %s19, 0
    %p171 = por %p169, %p170
    %p172 = scmp.ne.s32.totalorder %s160, %s161
    %p173 = scmp.eq.s32.totalorder %s20, 1
    %p174 = por %p172, %p173
    %p176 = scmp.ne.s32.totalorder %s161, %s175
    %p177 = scmp.eq.s32.totalorder %s20, 0
    %p178 = por %p176, %p177
    %s180 = sadd.s32 %s179, 1
    %p183 = scmp.eq.s32.totalorder %s14, 1
    %p184 = scmp.ne.s32.totalorder %s179, %s181
    %p185 = scmp.eq.s32.totalorder %s14, 0
    %p186 = por %p184, %p185
    %p187 = scmp.ne.s32.totalorder %s179, %s181
    %p188 = scmp.eq.s32.totalorder %s19, 1
    %p189 = por %p187, %p188
    %p190 = scmp.ne.s32.totalorder %s181, %s182
    %p191 = scmp.eq.s32.totalorder %s19, 0
    %p192 = por %p190, %p191
    %p193 = scmp.ne.s32.totalorder %s181, %s182
    %p194 = scmp.eq.s32.totalorder %s20, 1
    %p195 = por %p193, %p194
    %p197 = scmp.ne.s32.totalorder %s182, %s196
    %p198 = scmp.eq.s32.totalorder %s20, 0
    %p199 = por %p197, %p198
    %s200 = ssub.s32 %s14, %s21
    %p201 = scmp.eq.s32.totalorder %s200, 0
    %s203 = sadd.s32 %s202, 1
    %s204 = scalar_select %p201, %s202, %s203
    %p207 = pneg %p201
    %p208 = scmp.eq.s32.totalorder %s14, 1
    %p209 = por %p207, %p208
    %p210 = scmp.ne.s32.totalorder %s202, %s205
    %p211 = scmp.eq.s32.totalorder %s14, 0
    %p212 = por %p210, %p211
    %p213 = scmp.ne.s32.totalorder %s202, %s205
    %p214 = scmp.eq.s32.totalorder %s19, 1
    %p215 = por %p213, %p214
    %p216 = scmp.ne.s32.totalorder %s205, %s206
    %p217 = scmp.eq.s32.totalorder %s19, 0
    %p218 = por %p216, %p217
    %p219 = scmp.ne.s32.totalorder %s205, %s206
    %p220 = scmp.eq.s32.totalorder %s20, 1
    %p221 = por %p219, %p220
    %p223 = scmp.ne.s32.totalorder %s206, %s222
    %p224 = scmp.eq.s32.totalorder %s20, 0
    %p225 = por %p223, %p224
    %p226 = scmp.le.s32.totalorder 1, %s14
    %p227 = scmp.lt.s32.totalorder %s14, 3
    %p228 = pnand %p226, %p227
    %p229 = pneg %p228
    // Predicated region
    $region9: #{distilbert_class_forward.7} parent=5 // pred_check
      _
    $region10: #{distilbert_class_forward.7} parent=5 // pred_check_branch
      %231 = sbr.rel (%p228) target = $region12
    $region11: #{distilbert_class_forward.7} parent=5 // pred_region
      %s232 = ssub.s32 %s14, 1
      // Predicated region
      $region13: #{distilbert_class_forward.7} parent=11 // pred_check
        %p233 = pneg %p87
      $region14: #{distilbert_class_forward.7} parent=11 // pred_check_branch
        %235 = sbr.rel (%p233) target = $region16
      $region15: #{distilbert_class_forward.7} parent=11 // pred_region
        _
      $region16: #{distilbert_class_forward.7} parent=11 // pred_fallthru
        _
      // Predicated region
      $region17: #{distilbert_class_forward.7} parent=11 // pred_check
        %p236 = pneg %p108
      $region18: #{distilbert_class_forward.7} parent=11 // pred_check_branch
        %238 = sbr.rel (%p236) target = $region20
      $region19: #{distilbert_class_forward.7} parent=11 // pred_region
        _
      $region20: #{distilbert_class_forward.7} parent=11 // pred_fallthru
        _
      // Predicated region
      $region21: #{distilbert_class_forward.7} parent=11 // pred_check
        %p239 = pneg %p129
      $region22: #{distilbert_class_forward.7} parent=11 // pred_check_branch
        %241 = sbr.rel (%p239) target = $region24
      $region23: #{distilbert_class_forward.7} parent=11 // pred_region
        _
      $region24: #{distilbert_class_forward.7} parent=11 // pred_fallthru
        _
      // Predicated region
      $region25: #{distilbert_class_forward.7} parent=11 // pred_check
        %p242 = pneg %p150
      $region26: #{distilbert_class_forward.7} parent=11 // pred_check_branch
        %244 = sbr.rel (%p242) target = $region28
      $region27: #{distilbert_class_forward.7} parent=11 // pred_region
        _
      $region28: #{distilbert_class_forward.7} parent=11 // pred_fallthru
        _
      // Predicated region
      $region29: #{distilbert_class_forward.7} parent=11 // pred_check
        %p245 = pneg %p171
      $region30: #{distilbert_class_forward.7} parent=11 // pred_check_branch
        %247 = sbr.rel (%p245) target = $region32
      $region31: #{distilbert_class_forward.7} parent=11 // pred_region
        _
      $region32: #{distilbert_class_forward.7} parent=11 // pred_fallthru
        _
      // Predicated region
      $region33: #{distilbert_class_forward.7} parent=11 // pred_check
        %p248 = pneg %p192
      $region34: #{distilbert_class_forward.7} parent=11 // pred_check_branch
        %250 = sbr.rel (%p248) target = $region36
      $region35: #{distilbert_class_forward.7} parent=11 // pred_region
        _
      $region36: #{distilbert_class_forward.7} parent=11 // pred_fallthru
        _
    $region12: #{distilbert_class_forward.7} parent=5 // pred_fallthru
      _
    %p251 = scmp.lt.s32.totalorder %s14, 2
    // Predicated region
    $region37: #{distilbert_class_forward.7} parent=5 // pred_check
      %p252 = pneg %p251
    $region38: #{distilbert_class_forward.7} parent=5 // pred_check_branch
      %254 = sbr.rel (%p252) target = $region40
    $region39: #{distilbert_class_forward.7} parent=5 // pred_region
      // Predicated region
      $region41: #{distilbert_class_forward.7} parent=39 // pred_check
        %p255 = pneg %p34
      $region42: #{distilbert_class_forward.7} parent=39 // pred_check_branch
        %257 = sbr.rel (%p255) target = $region44
      $region43: #{distilbert_class_forward.7} parent=39 // pred_region
        %p258 = scmp.lt.s32.totalorder %s14, 1
        %s259 = scalar_select %p258, %s14, 1
        %s260 = smul.addr %s259, 8
        %s261 = scalar_lea.vmem %s0, %s260
      $region44: #{distilbert_class_forward.7} parent=39 // pred_fallthru
        _
      // Predicated region
      $region45: #{distilbert_class_forward.7} parent=39 // pred_check
        %p262 = pneg %p60
      $region46: #{distilbert_class_forward.7} parent=39 // pred_check_branch
        %264 = sbr.rel (%p262) target = $region48
      $region47: #{distilbert_class_forward.7} parent=39 // pred_region
        %p265 = scmp.lt.s32.totalorder %s14, 1
        %s266 = scalar_select %p265, %s14, 1
        %s267 = scalar_lea.vmem %s1, %s266
      $region48: #{distilbert_class_forward.7} parent=39 // pred_fallthru
        _
    $region40: #{distilbert_class_forward.7} parent=5 // pred_fallthru
      _
    %p268 = scmp.le.s32.totalorder 1, %s14
    %p269 = scmp.lt.s32.totalorder %s14, 3
    %p270 = pnand %p268, %p269
    %p271 = pneg %p270
    // Predicated region
    $region49: #{distilbert_class_forward.7} parent=5 // pred_check
      _
    $region50: #{distilbert_class_forward.7} parent=5 // pred_check_branch
      %273 = sbr.rel (%p270) target = $region52
    $region51: #{distilbert_class_forward.7} parent=5 // pred_region
      %s274 = ssub.s32 %s14, 1
      %p275 = scmp.lt.s32.totalorder %s19, 1
      %s276 = scalar_select %p275, %s19, 1
      %s277 = smul.addr %s276, 8
      %s278 = scalar_lea.vmem %s0, %s277
      %p279 = pneg %p40
      %p280 = pneg %p37
      %p281 = scmp.lt.s32.totalorder %s19, 1
      %s282 = scalar_select %p281, %s19, 1
      %s283 = scalar_lea.vmem %s1, %s282
      %p284 = pneg %p66
      %p285 = pneg %p63
      %p286 = pneg %p87
      %p287 = pneg %p84
      %p288 = pneg %p108
      %p289 = pneg %p105
      %p290 = pneg %p129
      %p291 = pneg %p126
      %p292 = pneg %p150
      %p293 = pneg %p147
      %p294 = pneg %p171
      %p295 = pneg %p168
      %p296 = pneg %p192
      %p297 = pneg %p189
      %p298 = pneg %p218
      %p299 = pneg %p215
      %p300 = scmp.lt.s32.totalorder %s19, 1
      %s301 = scalar_select %p300, %s19, 1
      %s302 = smul.addr %s301, 8
      %s303 = scalar_lea.vmem %s8, %s302
      %p304 = scmp.lt.s32.totalorder %s19, 1
      %s305 = scalar_select %p304, %s19, 1
      %s306 = smul.addr %s305, 8
      %s307 = scalar_lea.vmem %s0, %s306
      %p308 = scmp.lt.s32.totalorder %s19, 1
      %s309 = scalar_select %p308, %s19, 1
      %s310 = scalar_lea.vmem %s1, %s309
      %p311 = scmp.lt.s32.totalorder %s19, 1
      %s312 = scalar_select %p311, %s19, 1
      %s313 = smul.addr %s312, 8
      %s314 = scalar_lea.vmem %s8, %s313
      %v316 = vld [vmem:[%s307] sm:$0xff]
      %v317 = vpack.c.bf16 %v316, %v316
      %v318 = vld [vmem:[%s2] sm:$0xff]
      %v319 = vld [vmem:[%s2 + $0x8] sm:$0xf]
      %v320 = vld [vmem:[%s2 + $0xc] sm:$0xff]
      %v321 = vld [vmem:[%s2 + $0x14] sm:$0xf]
      %v322 = vld [vmem:[%s2 + $0x18] sm:$0xff]
      %v323 = vld [vmem:[%s2 + $0x20] sm:$0xf]
      %v324 = vld [vmem:[%s2 + $0x24] sm:$0xff]
      %v325 = vld [vmem:[%s2 + $0x2c] sm:$0xf]
      %v326 = vld [vmem:[%s2 + $0x30] sm:$0xff]
      %v327 = vld [vmem:[%s2 + $0x38] sm:$0xf]
      %v328 = vld [vmem:[%s2 + $0x3c] sm:$0xff]
      %v329 = vld [vmem:[%s2 + $0x44] sm:$0xf]
      %v330 = vld [vmem:[%s2 + $0x48] sm:$0xff]
      %v331 = vld [vmem:[%s2 + $0x50] sm:$0xf]
      %v332 = vld [vmem:[%s2 + $0x54] sm:$0xff]
      %v333 = vld [vmem:[%s2 + $0x5c] sm:$0xf]
      %v334 = vld [vmem:[%s2 + $0x60] sm:$0xff]
      %v335 = vld [vmem:[%s2 + $0x68] sm:$0xf]
      %v336 = vld [vmem:[%s2 + $0x6c] sm:$0xff]
      %v337 = vld [vmem:[%s2 + $0x74] sm:$0xf]
      %v338 = vld [vmem:[%s2 + $0x78] sm:$0xff]
      %v339 = vld [vmem:[%s2 + $0x80] sm:$0xf]
      %v340 = vld [vmem:[%s2 + $0x84] sm:$0xff]
      %v341 = vld [vmem:[%s2 + $0x8c] sm:$0xf]
      %v342 = vld [vmem:[%s2 + $0x90] sm:$0xff]
      %v343 = vld [vmem:[%s2 + $0x98] sm:$0xf]
      %v344 = vld [vmem:[%s2 + $0x9c] sm:$0xff]
      %v345 = vld [vmem:[%s2 + $0xa4] sm:$0xf]
      %v346 = vld [vmem:[%s2 + $0xa8] sm:$0xff]
      %v347 = vld [vmem:[%s2 + $0xb0] sm:$0xf]
      %v348 = vld [vmem:[%s2 + $0xb4] sm:$0xff]
      %v349 = vld [vmem:[%s2 + $0xbc] sm:$0xf]
      %v350 = vld [vmem:[%s3] sm:$0x7]
      %v352 = vlaneseq
      %v353 = vshrl.u32 %v352, 7
      %v354 = vsub.s32 0, %v353
      %v355 = vrot.slane %v350, %v354
      %v356 = vlaneseq
      %v357 = vshrl.u32 %v356, 7
      %v358 = vsub.s32 1, %v357
      %v359 = vrot.slane %v350, %v358
      %v360 = vlaneseq
      %v361 = vshrl.u32 %v360, 7
      %v362 = vsub.s32 2, %v361
      %v363 = vrot.slane %v350, %v362
      %v399 = vunpack.c.l.b16 %v318
      %v400 = vunpack.c.h.b16 %v318
      %v401 = vunpack.c.l.b16 %v319
      %v402 = vunpack.c.l.b16 %v320
      %v403 = vunpack.c.h.b16 %v320
      %v404 = vunpack.c.l.b16 %v321
      %v405 = vunpack.c.l.b16 %v322
      %v406 = vunpack.c.h.b16 %v322
      %v407 = vunpack.c.l.b16 %v323
      %v408 = vunpack.c.l.b16 %v324
      %v409 = vunpack.c.h.b16 %v324
      %v410 = vunpack.c.l.b16 %v325
      %v411 = vunpack.c.l.b16 %v326
      %v412 = vunpack.c.h.b16 %v326
      %v413 = vunpack.c.l.b16 %v327
      %v414 = vunpack.c.l.b16 %v328
      %v415 = vunpack.c.h.b16 %v328
      %v416 = vunpack.c.l.b16 %v329
      %v417 = vunpack.c.l.b16 %v330
      %v418 = vunpack.c.h.b16 %v330
      %v419 = vunpack.c.l.b16 %v331
      %v420 = vunpack.c.l.b16 %v332
      %v421 = vunpack.c.h.b16 %v332
      %v422 = vunpack.c.l.b16 %v333
      %v423 = vunpack.c.l.b16 %v334
      %v424 = vunpack.c.h.b16 %v334
      %v425 = vunpack.c.l.b16 %v335
      %v426 = vunpack.c.l.b16 %v336
      %v427 = vunpack.c.h.b16 %v336
      %v428 = vunpack.c.l.b16 %v337
      %v429 = vunpack.c.l.b16 %v338
      %v430 = vunpack.c.h.b16 %v338
      %v431 = vunpack.c.l.b16 %v339
      %v432 = vunpack.c.l.b16 %v340
      %v433 = vunpack.c.h.b16 %v340
      %v434 = vunpack.c.l.b16 %v341
      %v435 = vunpack.c.l.b16 %v342
      %v436 = vunpack.c.h.b16 %v342
      %v437 = vunpack.c.l.b16 %v343
      %v438 = vunpack.c.l.b16 %v344
      %v439 = vunpack.c.h.b16 %v344
      %v440 = vunpack.c.l.b16 %v345
      %v441 = vunpack.c.l.b16 %v346
      %v442 = vunpack.c.h.b16 %v346
      %v443 = vunpack.c.l.b16 %v347
      %v444 = vunpack.c.l.b16 %v348
      %v445 = vunpack.c.h.b16 %v348
      %v446 = vunpack.c.l.b16 %v349
      %v447 = vpack.c.b16 %v402, %v399
      %v448 = vpack.c.b16 %v403, %v400
      %v449 = vpack.c.b16 %v404, %v401
      %v450 = vpack.c.b16 %v408, %v405
      %v451 = vpack.c.b16 %v409, %v406
      %v452 = vpack.c.b16 %v410, %v407
      %v453 = vpack.c.b16 %v414, %v411
      %v454 = vpack.c.b16 %v415, %v412
      %v455 = vpack.c.b16 %v416, %v413
      %v456 = vpack.c.b16 %v420, %v417
      %v457 = vpack.c.b16 %v421, %v418
      %v458 = vpack.c.b16 %v422, %v419
      %v459 = vpack.c.b16 %v426, %v423
      %v460 = vpack.c.b16 %v427, %v424
      %v461 = vpack.c.b16 %v428, %v425
      %v462 = vpack.c.b16 %v432, %v429
      %v463 = vpack.c.b16 %v433, %v430
      %v464 = vpack.c.b16 %v434, %v431
      %v465 = vpack.c.b16 %v438, %v435
      %v466 = vpack.c.b16 %v439, %v436
      %v467 = vpack.c.b16 %v440, %v437
      %v468 = vpack.c.b16 %v444, %v441
      %v469 = vpack.c.b16 %v445, %v442
      %v470 = vpack.c.b16 %v446, %v443
      %495 = vmatprep.subr.bf16.mxu0 %v448
      %496 = vmatpush1.bf16.msra.mxu0 %v447
      %497 = vmatprep.subr.bf16.mxu0 %v451
      %498 = vmatpush1.bf16.msra.mxu0 %v450
      %499 = vmatprep.subr.bf16.mxu0 %v454
      %500 = vmatpush1.bf16.msra.mxu0 %v453
      %501 = vmatprep.subr.bf16.mxu0 %v457
      %502 = vmatpush1.bf16.msra.mxu0 %v456
      %503 = vmatprep.subr.bf16.mxu0 %v460
      %504 = vmatpush1.bf16.msra.mxu0 %v459
      %505 = vmatprep.subr.bf16.mxu0 %v463
      %506 = vmatpush1.bf16.msra.mxu0 %v462
      %507 = vmatprep.subr.bf16.mxu0 %v466
      %508 = vmatpush1.bf16.msra.mxu0 %v465
      %509 = vmatprep.subr.bf16.mxu0 %v469
      %510 = vmatpush1.bf16.msra.mxu0 %v468
      %511 = vmatprep.subr.bf16.mxu0 0
      %512 = vmatpush1.bf16.msra.mxu0 0
      %513 = vmatprep.subr.bf16.mxu0 0
      %514 = vmatpush1.bf16.msra.mxu0 0
      %515 = vmatprep.subr.bf16.mxu0 0
      %516 = vmatpush1.bf16.msra.mxu0 0
      %517 = vmatprep.subr.bf16.mxu0 0
      %518 = vmatpush1.bf16.msra.mxu0 0
      %519 = vmatprep.subr.bf16.mxu0 0
      %520 = vmatpush1.bf16.msra.mxu0 0
      %521 = vmatprep.subr.bf16.mxu0 0
      %522 = vmatpush1.bf16.msra.mxu0 0
      %523 = vmatprep.subr.bf16.mxu0 0
      %524 = vmatpush1.bf16.msra.mxu0 0
      %525 = vmatprep.subr.bf16.mxu0 0
      %526 = vmatpush1.bf16.msra.mxu0 0
      %527 = vmatprep.mubr.bf16.mxu0 0
      %528 = vmatmul.mubr.bf16.gmra.mrb[0].mxu0 %v317
      %v529 = vpop.f32.mrb[0].mxu0
      %v530 = vadd.f32 %v355, %v529
      %v531 = vpop.f32.mrb[0].mxu0
      %v532 = vadd.f32 %v359, %v531
      %v533 = vpop.f32.mrb[0].mxu0
      %v534 = vpop.f32.mrb[0].mxu0
      %535 = vdwg.mxu0
      %536 = vmatprep.subr.bf16.mxu0 0
      %537 = vmatpush1.bf16.msra.mxu0 %v449
      %538 = vmatprep.subr.bf16.mxu0 0
      %539 = vmatpush1.bf16.msra.mxu0 %v452
      %540 = vmatprep.subr.bf16.mxu0 0
      %541 = vmatpush1.bf16.msra.mxu0 %v455
      %542 = vmatprep.subr.bf16.mxu0 0
      %543 = vmatpush1.bf16.msra.mxu0 %v458
      %544 = vmatprep.subr.bf16.mxu0 0
      %545 = vmatpush1.bf16.msra.mxu0 %v461
      %546 = vmatprep.subr.bf16.mxu0 0
      %547 = vmatpush1.bf16.msra.mxu0 %v464
      %548 = vmatprep.subr.bf16.mxu0 0
      %549 = vmatpush1.bf16.msra.mxu0 %v467
      %550 = vmatprep.subr.bf16.mxu0 0
      %551 = vmatpush1.bf16.msra.mxu0 %v470
      %552 = vmatprep.subr.bf16.mxu0 0
      %553 = vmatpush1.bf16.msra.mxu0 0
      %554 = vmatprep.subr.bf16.mxu0 0
      %555 = vmatpush1.bf16.msra.mxu0 0
      %556 = vmatprep.subr.bf16.mxu0 0
      %557 = vmatpush1.bf16.msra.mxu0 0
      %558 = vmatprep.subr.bf16.mxu0 0
      %559 = vmatpush1.bf16.msra.mxu0 0
      %560 = vmatprep.subr.bf16.mxu0 0
      %561 = vmatpush1.bf16.msra.mxu0 0
      %562 = vmatprep.subr.bf16.mxu0 0
      %563 = vmatpush1.bf16.msra.mxu0 0
      %564 = vmatprep.subr.bf16.mxu0 0
      %565 = vmatpush1.bf16.msra.mxu0 0
      %566 = vmatprep.subr.bf16.mxu0 0
      %567 = vmatpush1.bf16.msra.mxu0 0
      %568 = vmatprep.mubr.bf16.mxu0 0
      %569 = vmatmul.mubr.bf16.gmra.mrb[0].mxu0 %v317
      %v570 = vpop.f32.mrb[0].mxu0
      %v571 = vadd.f32 %v363, %v570
      %v572 = vpop.f32.mrb[0].mxu0
      %v573 = vpop.f32.mrb[0].mxu0
      %v574 = vpop.f32.mrb[0].mxu0
      %575 = vdwg.mxu0
      %v576 = vld [vmem:[%s310] sm:$0x1]
      %v577 = vld [vmem:[%s4] sm:$0xf]
      %v578 = vld [vmem:[%s4 + $0x4] sm:$0xf]
      %v579 = vld [vmem:[%s4 + $0x8] sm:$0xf]
      %v580 = vld [vmem:[%s4 + $0xc] sm:$0xf]
      %v581 = vld [vmem:[%s4 + $0x10] sm:$0xf]
      %v582 = vld [vmem:[%s4 + $0x14] sm:$0xf]
      %v583 = vld [vmem:[%s4 + $0x18] sm:$0xf]
      %v584 = vld [vmem:[%s4 + $0x1c] sm:$0xf]
      %v585 = vld [vmem:[%s4 + $0x20] sm:$0xf]
      %v586 = vld [vmem:[%s4 + $0x24] sm:$0xf]
      %v587 = vld [vmem:[%s4 + $0x28] sm:$0xf]
      %v588 = vld [vmem:[%s4 + $0x2c] sm:$0xf]
      %v589 = vld [vmem:[%s4 + $0x30] sm:$0xf]
      %v590 = vld [vmem:[%s4 + $0x34] sm:$0xf]
      %v591 = vld [vmem:[%s4 + $0x38] sm:$0xf]
      %v592 = vld [vmem:[%s4 + $0x3c] sm:$0xf]
      %v593 = vpack.c.bf16 %v530, %v530
      %v594 = vpack.c.bf16 %v532, %v532
      %v595 = vpack.c.bf16 %v571, %v571
      %vm596 = vcmask 261120
      %v598 = vsel %vm596, %v593, 0
      %v601 = vsel %vm596, %v594, 0
      %603 = vmatprep.subr.bf16.mxu0 0
      %604 = vmatpush1.bf16.xpose.msra.mxu0 %v601
      %605 = vmatprep.subr.bf16.mxu0 0
      %606 = vmatpush1.bf16.xpose.msra.mxu0 0
      %607 = vmatprep.subr.bf16.mxu0 0
      %608 = vmatpush1.bf16.xpose.msra.mxu0 0
      %609 = vmatprep.subr.bf16.mxu0 0
      %610 = vmatpush1.bf16.xpose.msra.mxu0 0
      %611 = vmatprep.subr.bf16.mxu0 0
      %612 = vmatpush1.bf16.xpose.msra.mxu0 0
      %613 = vmatprep.subr.bf16.mxu0 0
      %614 = vmatpush1.bf16.xpose.msra.mxu0 0
      %615 = vmatprep.subr.bf16.mxu0 0
      %616 = vmatpush1.bf16.xpose.msra.mxu0 0
      %617 = vmatprep.subr.bf16.mxu0 0
      %618 = vmatpush1.bf16.xpose.msra.mxu0 0
      %619 = vmatprep.subr.bf16.mxu0 0
      %620 = vmatpush1.bf16.xpose.msra.mxu0 0
      %621 = vmatprep.subr.bf16.mxu0 0
      %622 = vmatpush1.bf16.xpose.msra.mxu0 0
      %623 = vmatprep.subr.bf16.mxu0 0
      %624 = vmatpush1.bf16.xpose.msra.mxu0 0
      %625 = vmatprep.subr.bf16.mxu0 0
      %626 = vmatpush1.bf16.xpose.msra.mxu0 0
      %627 = vmatprep.subr.bf16.mxu0 0
      %628 = vmatpush1.bf16.xpose.msra.mxu0 0
      %629 = vmatprep.subr.bf16.mxu0 0
      %630 = vmatpush1.bf16.xpose.msra.mxu0 0
      %631 = vmatprep.subr.bf16.mxu0 0
      %632 = vmatpush1.bf16.xpose.msra.mxu0 0
      %633 = vmatprep.subr.bf16.mxu0 0
      %634 = vmatpush1.bf16.xpose.msra.mxu0 0
      %635 = vmatprep.mubr.bf16.mxu0 0
      %636 = vmatmul.mubr.bf16.gmra.mrb[0].mxu0 %v598
      %v637 = vpop.f32.mrb[0].mxu0
      %v638 = vadd.f32 0.0, %v637
      %v639 = vpop.f32.mrb[0].mxu0
      %v640 = vpop.f32.mrb[0].mxu0
      %v641 = vpop.f32.mrb[0].mxu0
      %642 = vdwg.mxu0
      %v643 = vmul.f32 %v638, 0.17677669
      %vm644 = vcmp.gt.f32.partialorder %v576, 0.0
      %v645 = vsel %vm644, 1, 0
      %v646 = vlaneseq
      %v647 = vshrl.u32 %v646, 7
      %v648 = vsub.s32 0, %v647
      %v649 = vrot.slane %v645, %v648
      %vm650 = vcmp.eq.s32.totalorder %v649, 1
      %v651 = vsel %vm650, %v643, -1e+30
      %vm652 = vcmask 64512
      %v653 = vsel %vm652, %v651, -inf
      %654 = vmax.xlane.f32.xlu0 %v653
      %v655 = vpop.xlane.xlu0 %654
      %v656 = vsub.f32 %v651, %v655
      %v657 = vmul.f32 %v656, 1.442695
      %v658 = vpow.pop %v657
      %v659 = vsel %vm652, %v658, 0.0
      %660 = vadd.xlane.f32.xlu0 %v659
      %v661 = vpop.xlane.xlu0 %660
      %v662 = vrcp.pop %v661
      %v663 = vmul.f32 %v658, %v662
      %v664 = vpack.c.bf16 %v663, %v663
      %v666 = vsel %vm652, %v664, 0
      %vm668 = vcmask 1043456
      %v670 = vsel %vm668, %v595, 0
      %672 = vmatprep.subr.bf16.mxu0 0
      %673 = vmatpush1.bf16.msra.mxu0 %v670
      %674 = vmatprep.subr.bf16.mxu0 0
      %675 = vmatpush1.bf16.msra.mxu0 0
      %676 = vmatprep.subr.bf16.mxu0 0
      %677 = vmatpush1.bf16.msra.mxu0 0
      %678 = vmatprep.subr.bf16.mxu0 0
      %679 = vmatpush1.bf16.msra.mxu0 0
      %680 = vmatprep.subr.bf16.mxu0 0
      %681 = vmatpush1.bf16.msra.mxu0 0
      %682 = vmatprep.subr.bf16.mxu0 0
      %683 = vmatpush1.bf16.msra.mxu0 0
      %684 = vmatprep.subr.bf16.mxu0 0
      %685 = vmatpush1.bf16.msra.mxu0 0
      %686 = vmatprep.subr.bf16.mxu0 0
      %687 = vmatpush1.bf16.msra.mxu0 0
      %688 = vmatprep.subr.bf16.mxu0 0
      %689 = vmatpush1.bf16.msra.mxu0 0
      %690 = vmatprep.subr.bf16.mxu0 0
      %691 = vmatpush1.bf16.msra.mxu0 0
      %692 = vmatprep.subr.bf16.mxu0 0
      %693 = vmatpush1.bf16.msra.mxu0 0
      %694 = vmatprep.subr.bf16.mxu0 0
      %695 = vmatpush1.bf16.msra.mxu0 0
      %696 = vmatprep.subr.bf16.mxu0 0
      %697 = vmatpush1.bf16.msra.mxu0 0
      %698 = vmatprep.subr.bf16.mxu0 0
      %699 = vmatpush1.bf16.msra.mxu0 0
      %700 = vmatprep.subr.bf16.mxu0 0
      %701 = vmatpush1.bf16.msra.mxu0 0
      %702 = vmatprep.subr.bf16.mxu0 0
      %703 = vmatpush1.bf16.msra.mxu0 0
      %704 = vmatprep.mubr.bf16.mxu0 0
      %705 = vmatmul.mubr.bf16.gmra.mrb[0].mxu0 %v666
      %v706 = vpop.f32.mrb[0].mxu0
      %v707 = vadd.f32 0.0, %v706
      %v708 = vpop.f32.mrb[0].mxu0
      %v709 = vpop.f32.mrb[0].mxu0
      %v710 = vpop.f32.mrb[0].mxu0
      %711 = vdwg.mxu0
      %v712 = vpack.c.bf16 %v707, %v707
      %714 = vrot.lane.b32.xlu0 %v593, 96
      %v715 = vpop.permute.xlu0 %714
      %717 = vrot.lane.b32.xlu0 %v594, 96
      %v718 = vpop.permute.xlu0 %717
      %v720 = vsel %vm596, %v715, 0
      %v723 = vsel %vm596, %v718, 0
      %725 = vmatprep.subr.bf16.mxu0 0
      %726 = vmatpush1.bf16.xpose.msra.mxu0 %v723
      %727 = vmatprep.subr.bf16.mxu0 0
      %728 = vmatpush1.bf16.xpose.msra.mxu0 0
      %729 = vmatprep.subr.bf16.mxu0 0
      %730 = vmatpush1.bf16.xpose.msra.mxu0 0
      %731 = vmatprep.subr.bf16.mxu0 0
      %732 = vmatpush1.bf16.xpose.msra.mxu0 0
      %733 = vmatprep.subr.bf16.mxu0 0
      %734 = vmatpush1.bf16.xpose.msra.mxu0 0
      %735 = vmatprep.subr.bf16.mxu0 0
      %736 = vmatpush1.bf16.xpose.msra.mxu0 0
      %737 = vmatprep.subr.bf16.mxu0 0
      %738 = vmatpush1.bf16.xpose.msra.mxu0 0
      %739 = vmatprep.subr.bf16.mxu0 0
      %740 = vmatpush1.bf16.xpose.msra.mxu0 0
      %741 = vmatprep.subr.bf16.mxu0 0
      %742 = vmatpush1.bf16.xpose.msra.mxu0 0
      %743 = vmatprep.subr.bf16.mxu0 0
      %744 = vmatpush1.bf16.xpose.msra.mxu0 0
      %745 = vmatprep.subr.bf16.mxu0 0
      %746 = vmatpush1.bf16.xpose.msra.mxu0 0
      %747 = vmatprep.subr.bf16.mxu0 0
      %748 = vmatpush1.bf16.xpose.msra.mxu0 0
      %749 = vmatprep.subr.bf16.mxu0 0
      %750 = vmatpush1.bf16.xpose.msra.mxu0 0
      %751 = vmatprep.subr.bf16.mxu0 0
      %752 = vmatpush1.bf16.xpose.msra.mxu0 0
      %753 = vmatprep.subr.bf16.mxu0 0
      %754 = vmatpush1.bf16.xpose.msra.mxu0 0
      %755 = vmatprep.subr.bf16.mxu0 0
      %756 = vmatpush1.bf16.xpose.msra.mxu0 0
      %757 = vmatprep.mubr.bf16.mxu0 0
      %758 = vmatmul.mubr.bf16.gmra.mrb[0].mxu0 %v720
      %v759 = vpop.f32.mrb[0].mxu0
      %v760 = vadd.f32 0.0, %v759
      %v761 = vpop.f32.mrb[0].mxu0
      %v762 = vpop.f32.mrb[0].mxu0
      %v763 = vpop.f32.mrb[0].mxu0
      %764 = vdwg.mxu0
      %v765 = vmul.f32 %v760, 0.17677669
      %v766 = vsel %vm650, %v765, -1e+30
      %v767 = vsel %vm652, %v766, -inf
      %768 = vmax.xlane.f32.xlu0 %v767
      %v769 = vpop.xlane.xlu0 %768
      %v770 = vsub.f32 %v766, %v769
      %v771 = vmul.f32 %v770, 1.442695
      %v772 = vpow.pop %v771
      %v773 = vsel %vm652, %v772, 0.0
      %774 = vadd.xlane.f32.xlu0 %v773
      %v775 = vpop.xlane.xlu0 %774
      %v776 = vrcp.pop %v775
      %v777 = vmul.f32 %v772, %v776
      %v778 = vpack.c.bf16 %v777, %v777
      %780 = vrot.lane.b32.xlu0 %v595, 96
      %v781 = vpop.permute.xlu0 %780
      %v783 = vsel %vm652, %v778, 0
      %v786 = vsel %vm668, %v781, 0
      %788 = vmatprep.subr.bf16.mxu0 0
      %789 = vmatpush1.bf16.msra.mxu0 %v786
      %790 = vmatprep.subr.bf16.mxu0 0
      %791 = vmatpush1.bf16.msra.mxu0 0
      %792 = vmatprep.subr.bf16.mxu0 0
      %793 = vmatpush1.bf16.msra.mxu0 0
      %794 = vmatprep.subr.bf16.mxu0 0
      %795 = vmatpush1.bf16.msra.mxu0 0
      %796 = vmatprep.subr.bf16.mxu0 0
      %797 = vmatpush1.bf16.msra.mxu0 0
      %798 = vmatprep.subr.bf16.mxu0 0
      %799 = vmatpush1.bf16.msra.mxu0 0
      %800 = vmatprep.subr.bf16.mxu0 0
      %801 = vmatpush1.bf16.msra.mxu0 0
      %802 = vmatprep.subr.bf16.mxu0 0
      %803 = vmatpush1.bf16.msra.mxu0 0
      %804 = vmatprep.subr.bf16.mxu0 0
      %805 = vmatpush1.bf16.msra.mxu0 0
      %806 = vmatprep.subr.bf16.mxu0 0
      %807 = vmatpush1.bf16.msra.mxu0 0
      %808 = vmatprep.subr.bf16.mxu0 0
      %809 = vmatpush1.bf16.msra.mxu0 0
      %810 = vmatprep.subr.bf16.mxu0 0
      %811 = vmatpush1.bf16.msra.mxu0 0
      %812 = vmatprep.subr.bf16.mxu0 0
      %813 = vmatpush1.bf16.msra.mxu0 0
      %814 = vmatprep.subr.bf16.mxu0 0
      %815 = vmatpush1.bf16.msra.mxu0 0
      %816 = vmatprep.subr.bf16.mxu0 0
      %817 = vmatpush1.bf16.msra.mxu0 0
      %818 = vmatprep.subr.bf16.mxu0 0
      %819 = vmatpush1.bf16.msra.mxu0 0
      %820 = vmatprep.mubr.bf16.mxu0 0
      %821 = vmatmul.mubr.bf16.gmra.mrb[0].mxu0 %v783
      %v822 = vpop.f32.mrb[0].mxu0
      %v823 = vadd.f32 0.0, %v822
      %v824 = vpop.f32.mrb[0].mxu0
      %v825 = vpop.f32.mrb[0].mxu0
      %v826 = vpop.f32.mrb[0].mxu0
      %827 = vdwg.mxu0
      %v828 = vpack.c.bf16 %v823, %v823
      %v833 = vunpack.c.l.b16 %v581
      %v834 = vunpack.c.l.b16 %v582
      %v835 = vunpack.c.l.b16 %v583
      %v836 = vunpack.c.l.b16 %v584
      %v837 = vpack.c.b16 %v834, %v833
      %v838 = vpack.c.b16 %v836, %v835
      %v842 = vsel %vm596, %v828, 0
      %844 = vmatprep.subr.bf16.mxu0 0
      %845 = vmatpush1.bf16.msra.mxu0 %v837
      %846 = vmatprep.subr.bf16.mxu0 0
      %847 = vmatpush1.bf16.msra.mxu0 %v838
      %848 = vmatprep.subr.bf16.mxu0 0
      %849 = vmatpush1.bf16.msra.mxu0 0
      %850 = vmatprep.subr.bf16.mxu0 0
      %851 = vmatpush1.bf16.msra.mxu0 0
      %852 = vmatprep.subr.bf16.mxu0 0
      %853 = vmatpush1.bf16.msra.mxu0 0
      %854 = vmatprep.subr.bf16.mxu0 0
      %855 = vmatpush1.bf16.msra.mxu0 0
      %856 = vmatprep.subr.bf16.mxu0 0
      %857 = vmatpush1.bf16.msra.mxu0 0
      %858 = vmatprep.subr.bf16.mxu0 0
      %859 = vmatpush1.bf16.msra.mxu0 0
      %860 = vmatprep.subr.bf16.mxu0 0
      %861 = vmatpush1.bf16.msra.mxu0 0
      %862 = vmatprep.subr.bf16.mxu0 0
      %863 = vmatpush1.bf16.msra.mxu0 0
      %864 = vmatprep.subr.bf16.mxu0 0
      %865 = vmatpush1.bf16.msra.mxu0 0
      %866 = vmatprep.subr.bf16.mxu0 0
      %867 = vmatpush1.bf16.msra.mxu0 0
      %868 = vmatprep.subr.bf16.mxu0 0
      %869 = vmatpush1.bf16.msra.mxu0 0
      %870 = vmatprep.subr.bf16.mxu0 0
      %871 = vmatpush1.bf16.msra.mxu0 0
      %872 = vmatprep.subr.bf16.mxu0 0
      %873 = vmatpush1.bf16.msra.mxu0 0
      %874 = vmatprep.subr.bf16.mxu0 0
      %875 = vmatpush1.bf16.msra.mxu0 0
      %876 = vmatprep.mubr.bf16.mxu0 0
      %877 = vmatmul.mubr.bf16.gmra.mrb[0].mxu0 %v842
      %v878 = vpop.f32.mrb[0].mxu0
      %v879 = vadd.f32 0.0, %v878
      %v880 = vpop.f32.mrb[0].mxu0
      %v881 = vpop.f32.mrb[0].mxu0
      %v882 = vpop.f32.mrb[0].mxu0
      %883 = vdwg.mxu0
      %v888 = vunpack.c.l.b16 %v577
      %v889 = vunpack.c.l.b16 %v578
      %v890 = vunpack.c.l.b16 %v579
      %v891 = vunpack.c.l.b16 %v580
      %v892 = vpack.c.b16 %v889, %v888
      %v893 = vpack.c.b16 %v891, %v890
      %v897 = vsel %vm596, %v712, 0
      %899 = vmatprep.subr.bf16.mxu0 0
      %900 = vmatpush1.bf16.msra.mxu0 %v892
      %901 = vmatprep.subr.bf16.mxu0 0
      %902 = vmatpush1.bf16.msra.mxu0 %v893
      %903 = vmatprep.subr.bf16.mxu0 0
      %904 = vmatpush1.bf16.msra.mxu0 0
      %905 = vmatprep.subr.bf16.mxu0 0
      %906 = vmatpush1.bf16.msra.mxu0 0
      %907 = vmatprep.subr.bf16.mxu0 0
      %908 = vmatpush1.bf16.msra.mxu0 0
      %909 = vmatprep.subr.bf16.mxu0 0
      %910 = vmatpush1.bf16.msra.mxu0 0
      %911 = vmatprep.subr.bf16.mxu0 0
      %912 = vmatpush1.bf16.msra.mxu0 0
      %913 = vmatprep.subr.bf16.mxu0 0
      %914 = vmatpush1.bf16.msra.mxu0 0
      %915 = vmatprep.subr.bf16.mxu0 0
      %916 = vmatpush1.bf16.msra.mxu0 0
      %917 = vmatprep.subr.bf16.mxu0 0
      %918 = vmatpush1.bf16.msra.mxu0 0
      %919 = vmatprep.subr.bf16.mxu0 0
      %920 = vmatpush1.bf16.msra.mxu0 0
      %921 = vmatprep.subr.bf16.mxu0 0
      %922 = vmatpush1.bf16.msra.mxu0 0
      %923 = vmatprep.subr.bf16.mxu0 0
      %924 = vmatpush1.bf16.msra.mxu0 0
      %925 = vmatprep.subr.bf16.mxu0 0
      %926 = vmatpush1.bf16.msra.mxu0 0
      %927 = vmatprep.subr.bf16.mxu0 0
      %928 = vmatpush1.bf16.msra.mxu0 0
      %929 = vmatprep.subr.bf16.mxu0 0
      %930 = vmatpush1.bf16.msra.mxu0 0
      %931 = vmatprep.mubr.bf16.mxu0 0
      %932 = vmatmul.mubr.bf16.gmra.mrb[0].mxu0 %v897
      %v933 = vpop.f32.mrb[0].mxu0
      %v934 = vadd.f32 %v879, %v933
      %v935 = vpop.f32.mrb[0].mxu0
      %v936 = vpop.f32.mrb[0].mxu0
      %v937 = vpop.f32.mrb[0].mxu0
      %938 = vdwg.mxu0
      %939 = vrot.lane.b32.xlu0 %v593, 64
      %v940 = vpop.permute.xlu0 %939
      %941 = vrot.lane.b32.xlu0 %v594, 64
      %v942 = vpop.permute.xlu0 %941
      %v944 = vsel %vm596, %v940, 0
      %v947 = vsel %vm596, %v942, 0
      %949 = vmatprep.subr.bf16.mxu0 0
      %950 = vmatpush1.bf16.xpose.msra.mxu0 %v947
      %951 = vmatprep.subr.bf16.mxu0 0
      %952 = vmatpush1.bf16.xpose.msra.mxu0 0
      %953 = vmatprep.subr.bf16.mxu0 0
      %954 = vmatpush1.bf16.xpose.msra.mxu0 0
      %955 = vmatprep.subr.bf16.mxu0 0
      %956 = vmatpush1.bf16.xpose.msra.mxu0 0
      %957 = vmatprep.subr.bf16.mxu0 0
      %958 = vmatpush1.bf16.xpose.msra.mxu0 0
      %959 = vmatprep.subr.bf16.mxu0 0
      %960 = vmatpush1.bf16.xpose.msra.mxu0 0
      %961 = vmatprep.subr.bf16.mxu0 0
      %962 = vmatpush1.bf16.xpose.msra.mxu0 0
      %963 = vmatprep.subr.bf16.mxu0 0
      %964 = vmatpush1.bf16.xpose.msra.mxu0 0
      %965 = vmatprep.subr.bf16.mxu0 0
      %966 = vmatpush1.bf16.xpose.msra.mxu0 0
      %967 = vmatprep.subr.bf16.mxu0 0
      %968 = vmatpush1.bf16.xpose.msra.mxu0 0
      %969 = vmatprep.subr.bf16.mxu0 0
      %970 = vmatpush1.bf16.xpose.msra.mxu0 0
      %971 = vmatprep.subr.bf16.mxu0 0
      %972 = vmatpush1.bf16.xpose.msra.mxu0 0
      %973 = vmatprep.subr.bf16.mxu0 0
      %974 = vmatpush1.bf16.xpose.msra.mxu0 0
      %975 = vmatprep.subr.bf16.mxu0 0
      %976 = vmatpush1.bf16.xpose.msra.mxu0 0
      %977 = vmatprep.subr.bf16.mxu0 0
      %978 = vmatpush1.bf16.xpose.msra.mxu0 0
      %979 = vmatprep.subr.bf16.mxu0 0
      %980 = vmatpush1.bf16.xpose.msra.mxu0 0
      %981 = vmatprep.mubr.bf16.mxu0 0
      %982 = vmatmul.mubr.bf16.gmra.mrb[0].mxu0 %v944
      %v983 = vpop.f32.mrb[0].mxu0
      %v984 = vadd.f32 0.0, %v983
      %v985 = vpop.f32.mrb[0].mxu0
      %v986 = vpop.f32.mrb[0].mxu0
      %v987 = vpop.f32.mrb[0].mxu0
      %988 = vdwg.mxu0
      %v989 = vmul.f32 %v984, 0.17677669
      %v990 = vsel %vm650, %v989, -1e+30
      %v991 = vsel %vm652, %v990, -inf
      %992 = vmax.xlane.f32.xlu0 %v991
      %v993 = vpop.xlane.xlu0 %992
      %v994 = vsub.f32 %v990, %v993
      %v995 = vmul.f32 %v994, 1.442695
      %v996 = vpow.pop %v995
      %v997 = vsel %vm652, %v996, 0.0
      %998 = vadd.xlane.f32.xlu0 %v997
      %v999 = vpop.xlane.xlu0 %998
      %v1000 = vrcp.pop %v999
      %v1001 = vmul.f32 %v996, %v1000
      %v1002 = vpack.c.bf16 %v1001, %v1001
      %1003 = vrot.lane.b32.xlu0 %v595, 64
      %v1004 = vpop.permute.xlu0 %1003
      %v1006 = vsel %vm652, %v1002, 0
      %v1009 = vsel %vm668, %v1004, 0
      %1011 = vmatprep.subr.bf16.mxu0 0
      %1012 = vmatpush1.bf16.msra.mxu0 %v1009
      %1013 = vmatprep.subr.bf16.mxu0 0
      %1014 = vmatpush1.bf16.msra.mxu0 0
      %1015 = vmatprep.subr.bf16.mxu0 0
      %1016 = vmatpush1.bf16.msra.mxu0 0
      %1017 = vmatprep.subr.bf16.mxu0 0
      %1018 = vmatpush1.bf16.msra.mxu0 0
      %1019 = vmatprep.subr.bf16.mxu0 0
      %1020 = vmatpush1.bf16.msra.mxu0 0
      %1021 = vmatprep.subr.bf16.mxu0 0
      %1022 = vmatpush1.bf16.msra.mxu0 0
      %1023 = vmatprep.subr.bf16.mxu0 0
      %1024 = vmatpush1.bf16.msra.mxu0 0
      %1025 = vmatprep.subr.bf16.mxu0 0
      %1026 = vmatpush1.bf16.msra.mxu0 0
      %1027 = vmatprep.subr.bf16.mxu0 0
      %1028 = vmatpush1.bf16.msra.mxu0 0
      %1029 = vmatprep.subr.bf16.mxu0 0
      %1030 = vmatpush1.bf16.msra.mxu0 0
      %1031 = vmatprep.subr.bf16.mxu0 0
      %1032 = vmatpush1.bf16.msra.mxu0 0
      %1033 = vmatprep.subr.bf16.mxu0 0
      %1034 = vmatpush1.bf16.msra.mxu0 0
      %1035 = vmatprep.subr.bf16.mxu0 0
      %1036 = vmatpush1.bf16.msra.mxu0 0
      %1037 = vmatprep.subr.bf16.mxu0 0
      %1038 = vmatpush1.bf16.msra.mxu0 0
      %1039 = vmatprep.subr.bf16.mxu0 0
      %1040 = vmatpush1.bf16.msra.mxu0 0
      %1041 = vmatprep.subr.bf16.mxu0 0
      %1042 = vmatpush1.bf16.msra.mxu0 0
      %1043 = vmatprep.mubr.bf16.mxu0 0
      %1044 = vmatmul.mubr.bf16.gmra.mrb[0].mxu0 %v1006
      %v1045 = vpop.f32.mrb[0].mxu0
      %v1046 = vadd.f32 0.0, %v1045
      %v1047 = vpop.f32.mrb[0].mxu0
      %v1048 = vpop.f32.mrb[0].mxu0
      %v1049 = vpop.f32.mrb[0].mxu0
      %1050 = vdwg.mxu0
      %v1051 = vpack.c.bf16 %v1046, %v1046
      %v1056 = vunpack.c.l.b16 %v585
      %v1057 = vunpack.c.l.b16 %v586
      %v1058 = vunpack.c.l.b16 %v587
      %v1059 = vunpack.c.l.b16 %v588
      %v1060 = vpack.c.b16 %v1057, %v1056
      %v1061 = vpack.c.b16 %v1059, %v1058
      %v1065 = vsel %vm596, %v1051, 0
      %1067 = vmatprep.subr.bf16.mxu0 0
      %1068 = vmatpush1.bf16.msra.mxu0 %v1060
      %1069 = vmatprep.subr.bf16.mxu0 0
      %1070 = vmatpush1.bf16.msra.mxu0 %v1061
      %1071 = vmatprep.subr.bf16.mxu0 0
      %1072 = vmatpush1.bf16.msra.mxu0 0
      %1073 = vmatprep.subr.bf16.mxu0 0
      %1074 = vmatpush1.bf16.msra.mxu0 0
      %1075 = vmatprep.subr.bf16.mxu0 0
      %1076 = vmatpush1.bf16.msra.mxu0 0
      %1077 = vmatprep.subr.bf16.mxu0 0
      %1078 = vmatpush1.bf16.msra.mxu0 0
      %1079 = vmatprep.subr.bf16.mxu0 0
      %1080 = vmatpush1.bf16.msra.mxu0 0
      %1081 = vmatprep.subr.bf16.mxu0 0
      %1082 = vmatpush1.bf16.msra.mxu0 0
      %1083 = vmatprep.subr.bf16.mxu0 0
      %1084 = vmatpush1.bf16.msra.mxu0 0
      %1085 = vmatprep.subr.bf16.mxu0 0
      %1086 = vmatpush1.bf16.msra.mxu0 0
      %1087 = vmatprep.subr.bf16.mxu0 0
      %1088 = vmatpush1.bf16.msra.mxu0 0
      %1089 = vmatprep.subr.bf16.mxu0 0
      %1090 = vmatpush1.bf16.msra.mxu0 0
      %1091 = vmatprep.subr.bf16.mxu0 0
      %1092 = vmatpush1.bf16.msra.mxu0 0
      %1093 = vmatprep.subr.bf16.mxu0 0
      %1094 = vmatpush1.bf16.msra.mxu0 0
      %1095 = vmatprep.subr.bf16.mxu0 0
      %1096 = vmatpush1.bf16.msra.mxu0 0
      %1097 = vmatprep.subr.bf16.mxu0 0
      %1098 = vmatpush1.bf16.msra.mxu0 0
      %1099 = vmatprep.mubr.bf16.mxu0 0
      %1100 = vmatmul.mubr.bf16.gmra.mrb[0].mxu0 %v1065
      %v1101 = vpop.f32.mrb[0].mxu0
      %v1102 = vadd.f32 0.0, %v1101
      %v1103 = vpop.f32.mrb[0].mxu0
      %v1104 = vpop.f32.mrb[0].mxu0
      %v1105 = vpop.f32.mrb[0].mxu0
      %1106 = vdwg.mxu0
      %v1107 = vadd.f32 %v934, %v1102
      %1108 = vrot.lane.b32.xlu0 %v593, 32
      %v1109 = vpop.permute.xlu0 %1108
      %1110 = vrot.lane.b32.xlu0 %v594, 32
      %v1111 = vpop.permute.xlu0 %1110
      %v1113 = vsel %vm596, %v1109, 0
      %v1116 = vsel %vm596, %v1111, 0
      %1118 = vmatprep.subr.bf16.mxu0 0
      %1119 = vmatpush1.bf16.xpose.msra.mxu0 %v1116
      %1120 = vmatprep.subr.bf16.mxu0 0
      %1121 = vmatpush1.bf16.xpose.msra.mxu0 0
      %1122 = vmatprep.subr.bf16.mxu0 0
      %1123 = vmatpush1.bf16.xpose.msra.mxu0 0
      %1124 = vmatprep.subr.bf16.mxu0 0
      %1125 = vmatpush1.bf16.xpose.msra.mxu0 0
      %1126 = vmatprep.subr.bf16.mxu0 0
      %1127 = vmatpush1.bf16.xpose.msra.mxu0 0
      %1128 = vmatprep.subr.bf16.mxu0 0
      %1129 = vmatpush1.bf16.xpose.msra.mxu0 0
      %1130 = vmatprep.subr.bf16.mxu0 0
      %1131 = vmatpush1.bf16.xpose.msra.mxu0 0
      %1132 = vmatprep.subr.bf16.mxu0 0
      %1133 = vmatpush1.bf16.xpose.msra.mxu0 0
      %1134 = vmatprep.subr.bf16.mxu0 0
      %1135 = vmatpush1.bf16.xpose.msra.mxu0 0
      %1136 = vmatprep.subr.bf16.mxu0 0
      %1137 = vmatpush1.bf16.xpose.msra.mxu0 0
      %1138 = vmatprep.subr.bf16.mxu0 0
      %1139 = vmatpush1.bf16.xpose.msra.mxu0 0
      %1140 = vmatprep.subr.bf16.mxu0 0
      %1141 = vmatpush1.bf16.xpose.msra.mxu0 0
      %1142 = vmatprep.subr.bf16.mxu0 0
      %1143 = vmatpush1.bf16.xpose.msra.mxu0 0
      %1144 = vmatprep.subr.bf16.mxu0 0
      %1145 = vmatpush1.bf16.xpose.msra.mxu0 0
      %1146 = vmatprep.subr.bf16.mxu0 0
      %1147 = vmatpush1.bf16.xpose.msra.mxu0 0
      %1148 = vmatprep.subr.bf16.mxu0 0
      %1149 = vmatpush1.bf16.xpose.msra.mxu0 0
      %1150 = vmatprep.mubr.bf16.mxu0 0
      %1151 = vmatmul.mubr.bf16.gmra.mrb[0].mxu0 %v1113
      %v1152 = vpop.f32.mrb[0].mxu0
      %v1153 = vadd.f32 0.0, %v1152
      %v1154 = vpop.f32.mrb[0].mxu0
      %v1155 = vpop.f32.mrb[0].mxu0
      %v1156 = vpop.f32.mrb[0].mxu0
      %1157 = vdwg.mxu0
      %v1158 = vmul.f32 %v1153, 0.17677669
      %v1159 = vsel %vm650, %v1158, -1e+30
      %v1160 = vsel %vm652, %v1159, -inf
      %1161 = vmax.xlane.f32.xlu0 %v1160
      %v1162 = vpop.xlane.xlu0 %1161
      %v1163 = vsub.f32 %v1159, %v1162
      %v1164 = vmul.f32 %v1163, 1.442695
      %v1165 = vpow.pop %v1164
      %v1166 = vsel %vm652, %v1165, 0.0
      %1167 = vadd.xlane.f32.xlu0 %v1166
      %v1168 = vpop.xlane.xlu0 %1167
      %v1169 = vrcp.pop %v1168
      %v1170 = vmul.f32 %v1165, %v1169
      %v1171 = vpack.c.bf16 %v1170, %v1170
      %1172 = vrot.lane.b32.xlu0 %v595, 32
      %v1173 = vpop.permute.xlu0 %1172
      %v1175 = vsel %vm652, %v1171, 0
      %v1178 = vsel %vm668, %v1173, 0
      %1180 = vmatprep.subr.bf16.mxu0 0
      %1181 = vmatpush1.bf16.msra.mxu0 %v1178
      %1182 = vmatprep.subr.bf16.mxu0 0
      %1183 = vmatpush1.bf16.msra.mxu0 0
      %1184 = vmatprep.subr.bf16.mxu0 0
      %1185 = vmatpush1.bf16.msra.mxu0 0
      %1186 = vmatprep.subr.bf16.mxu0 0
      %1187 = vmatpush1.bf16.msra.mxu0 0
      %1188 = vmatprep.subr.bf16.mxu0 0
      %1189 = vmatpush1.bf16.msra.mxu0 0
      %1190 = vmatprep.subr.bf16.mxu0 0
      %1191 = vmatpush1.bf16.msra.mxu0 0
      %1192 = vmatprep.subr.bf16.mxu0 0
      %1193 = vmatpush1.bf16.msra.mxu0 0
      %1194 = vmatprep.subr.bf16.mxu0 0
      %1195 = vmatpush1.bf16.msra.mxu0 0
      %1196 = vmatprep.subr.bf16.mxu0 0
      %1197 = vmatpush1.bf16.msra.mxu0 0
      %1198 = vmatprep.subr.bf16.mxu0 0
      %1199 = vmatpush1.bf16.msra.mxu0 0
      %1200 = vmatprep.subr.bf16.mxu0 0
      %1201 = vmatpush1.bf16.msra.mxu0 0
      %1202 = vmatprep.subr.bf16.mxu0 0
      %1203 = vmatpush1.bf16.msra.mxu0 0
      %1204 = vmatprep.subr.bf16.mxu0 0
      %1205 = vmatpush1.bf16.msra.mxu0 0
      %1206 = vmatprep.subr.bf16.mxu0 0
      %1207 = vmatpush1.bf16.msra.mxu0 0
      %1208 = vmatprep.subr.bf16.mxu0 0
      %1209 = vmatpush1.bf16.msra.mxu0 0
      %1210 = vmatprep.subr.bf16.mxu0 0
      %1211 = vmatpush1.bf16.msra.mxu0 0
      %1212 = vmatprep.mubr.bf16.mxu0 0
      %1213 = vmatmul.mubr.bf16.gmra.mrb[0].mxu0 %v1175
      %v1214 = vpop.f32.mrb[0].mxu0
      %v1215 = vadd.f32 0.0, %v1214
      %v1216 = vpop.f32.mrb[0].mxu0
      %v1217 = vpop.f32.mrb[0].mxu0
      %v1218 = vpop.f32.mrb[0].mxu0
      %1219 = vdwg.mxu0
      %v1220 = vpack.c.bf16 %v1215, %v1215
      %v1225 = vunpack.c.l.b16 %v589
      %v1226 = vunpack.c.l.b16 %v590
      %v1227 = vunpack.c.l.b16 %v591
      %v1228 = vunpack.c.l.b16 %v592
      %v1229 = vpack.c.b16 %v1226, %v1225
      %v1230 = vpack.c.b16 %v1228, %v1227
      %v1234 = vsel %vm596, %v1220, 0
      %1236 = vmatprep.subr.bf16.mxu0 0
      %1237 = vmatpush1.bf16.msra.mxu0 %v1229
      %1238 = vmatprep.subr.bf16.mxu0 0
      %1239 = vmatpush1.bf16.msra.mxu0 %v1230
      %1240 = vmatprep.subr.bf16.mxu0 0
      %1241 = vmatpush1.bf16.msra.mxu0 0
      %1242 = vmatprep.subr.bf16.mxu0 0
      %1243 = vmatpush1.bf16.msra.mxu0 0
      %1244 = vmatprep.subr.bf16.mxu0 0
      %1245 = vmatpush1.bf16.msra.mxu0 0
      %1246 = vmatprep.subr.bf16.mxu0 0
      %1247 = vmatpush1.bf16.msra.mxu0 0
      %1248 = vmatprep.subr.bf16.mxu0 0
      %1249 = vmatpush1.bf16.msra.mxu0 0
      %1250 = vmatprep.subr.bf16.mxu0 0
      %1251 = vmatpush1.bf16.msra.mxu0 0
      %1252 = vmatprep.subr.bf16.mxu0 0
      %1253 = vmatpush1.bf16.msra.mxu0 0
      %1254 = vmatprep.subr.bf16.mxu0 0
      %1255 = vmatpush1.bf16.msra.mxu0 0
      %1256 = vmatprep.subr.bf16.mxu0 0
      %1257 = vmatpush1.bf16.msra.mxu0 0
      %1258 = vmatprep.subr.bf16.mxu0 0
      %1259 = vmatpush1.bf16.msra.mxu0 0
      %1260 = vmatprep.subr.bf16.mxu0 0
      %1261 = vmatpush1.bf16.msra.mxu0 0
      %1262 = vmatprep.subr.bf16.mxu0 0
      %1263 = vmatpush1.bf16.msra.mxu0 0
      %1264 = vmatprep.subr.bf16.mxu0 0
      %1265 = vmatpush1.bf16.msra.mxu0 0
      %1266 = vmatprep.subr.bf16.mxu0 0
      %1267 = vmatpush1.bf16.msra.mxu0 0
      %1268 = vmatprep.mubr.bf16.mxu0 0
      %1269 = vmatmul.mubr.bf16.gmra.mrb[0].mxu0 %v1234
      %v1270 = vpop.f32.mrb[0].mxu0
      %v1271 = vadd.f32 0.0, %v1270
      %v1272 = vpop.f32.mrb[0].mxu0
      %v1273 = vpop.f32.mrb[0].mxu0
      %v1274 = vpop.f32.mrb[0].mxu0
      %1275 = vdwg.mxu0
      %v1276 = vadd.f32 %v1107, %v1271
      %v1277 = vadd.f32 %v316, %v1276
      %v1278 = vld [vmem:[%s5] sm:$0x1]
      %v1280 = vlaneseq
      %v1281 = vshrl.u32 %v1280, 7
      %v1282 = vsub.s32 0, %v1281
      %v1283 = vrot.slane %v1278, %v1282
      %v1285 = vadd.f32 %v1277, %v1283
      %1286 = vadd.xlane.f32.xlu0 %v1285
      %v1287 = vpop.xlane.xlu0 %1286
      %v1288 = vrcp.pop 128.0
      %v1289 = vmul.f32 %v1287, %v1288
      %v1290 = vsub.f32 %v1285, %v1289
      %v1291 = vmul.f32 %v1290, %v1290
      %1292 = vadd.xlane.f32.xlu0 %v1291
      %v1293 = vpop.xlane.xlu0 %1292
      %v1294 = vmul.f32 %v1293, %v1288
      %v1295 = vadd.f32 %v1294, 1e-12
      %v1296 = vrsqrt.pop %v1295
      %v1297 = vmul.f32 %v1290, %v1296
      %v1298 = vld [vmem:[%s6] sm:$0x1]
      %v1300 = vlaneseq
      %v1301 = vshrl.u32 %v1300, 7
      %v1302 = vsub.s32 0, %v1301
      %v1303 = vrot.slane %v1298, %v1302
      %v1305 = vmul.f32 %v1297, %v1303
      %v1306 = vld [vmem:[%s7] sm:$0x1]
      %v1308 = vlaneseq
      %v1309 = vshrl.u32 %v1308, 7
      %v1310 = vsub.s32 0, %v1309
      %v1311 = vrot.slane %v1306, %v1310
      %v1313 = vadd.f32 %v1305, %v1311
      %1314 = vst [vmem:[%s314] sm:$0xff] %v1313
      %p1315 = scmp.lt.s32.totalorder %s19, 1
      %s1316 = scalar_select %p1315, %s19, 1
      %s1317 = smul.addr %s1316, 8
      %s1318 = scalar_lea.vmem %s8, %s1317
      // Predicated region
      $region53: #{distilbert_class_forward.7} parent=51 // pred_check
        %p1319 = pneg %p215
      $region54: #{distilbert_class_forward.7} parent=51 // pred_check_branch
        %1321 = sbr.rel (%p1319) target = $region56
      $region55: #{distilbert_class_forward.7} parent=51 // pred_region
        _
      $region56: #{distilbert_class_forward.7} parent=51 // pred_fallthru
        _
    $region52: #{distilbert_class_forward.7} parent=5 // pred_fallthru
      _
    %p1322 = scmp.le.s32.totalorder 2, %s14
    // Predicated region
    $region57: #{distilbert_class_forward.7} parent=5 // pred_check
      %p1323 = pneg %p1322
    $region58: #{distilbert_class_forward.7} parent=5 // pred_check_branch
      %1325 = sbr.rel (%p1323) target = $region60
    $region59: #{distilbert_class_forward.7} parent=5 // pred_region
      %s1326 = ssub.s32 %s14, 2
      // Predicated region
      $region61: #{distilbert_class_forward.7} parent=59 // pred_check
        %p1327 = pneg %p221
      $region62: #{distilbert_class_forward.7} parent=59 // pred_check_branch
        %1329 = sbr.rel (%p1327) target = $region64
      $region63: #{distilbert_class_forward.7} parent=59 // pred_region
        %p1330 = scmp.lt.s32.totalorder %s20, 1
        %s1331 = scalar_select %p1330, %s20, 1
        %s1332 = smul.addr %s1331, 8
        %s1333 = scalar_lea.vmem %s8, %s1332
      $region64: #{distilbert_class_forward.7} parent=59 // pred_fallthru
        _
    $region60: #{distilbert_class_forward.7} parent=5 // pred_fallthru
      _
  $region6: #{distilbert_class_forward.7} parent=0 // loop_footer
    %s18 = sadd.s32 1, %s14
  $region7: #{distilbert_class_forward.7} parent=0 // loop_footer_branch
    %13 = sbr.rel target = $region3
  $region8: #{distilbert_class_forward.7} parent=0 // loop_exit
    _

</llo_original>
